<compile_context>
chip_gen: v7x
topology: tpu7x:2x2x1
jax: 0.10.0
libtpu: 0.0.40
codegen_flags: <defaults>
</compile_context>

<pallas_src>
import jax
import jax.numpy as jnp
from jax.experimental import pallas as pl
from jax.experimental.pallas import tpu as pltpu

_LANE = 128
_SUBLANE = 8


def _round_up(x, m):
    return (x + m - 1) // m * m


def _rgcn_xw_kernel(a_ref, xw_ref, invdeg_ref, bsum_ref, o_ref, acc_ref):
    """Hoisted-XW path: one (dst-tile, relation, src-tile) grid step.

    a_ref      : (TILE_D, TILE_S)  bf16  raw 0/1 adjacency block of relation r
    xw_ref     : (TILE_S, F_out_p) bf16  precomputed (X @ W_r) block
    invdeg_ref : (TILE_D, 1)       f32   1 / clamp(in_deg_r, 1) for this dst tile
    bsum_ref   : (1, F_out_p)      f32   sum_r b_r (added once)
    o_ref      : (TILE_D, F_out_p)       written once, at the last (r, s) step
    acc_ref    : (TILE_D, F_out_p) f32   accumulator, resident across (r, s)
    """
    r = pl.program_id(1)
    s = pl.program_id(2)
    last_r = pl.num_programs(1) - 1
    last_s = pl.num_programs(2) - 1

    @pl.when(jnp.logical_and(r == 0, s == 0))
    def _():
        acc_ref[...] = jnp.broadcast_to(bsum_ref[...], acc_ref.shape)

    msg = jnp.dot(a_ref[...], xw_ref[...], preferred_element_type=jnp.float32)
    acc_ref[...] += invdeg_ref[...] * msg

    @pl.when(jnp.logical_and(r == last_r, s == last_s))
    def _():
        o_ref[...] = acc_ref[...].astype(o_ref.dtype)


def _rgcn_ax_kernel(a_ref, x_ref, w_ref, invdeg_ref, bsum_ref, o_ref,
                    ax_ref, acc_ref):
    """A@X-first path: accumulate A@X over src tiles, apply W_r at the last tile.

    a_ref      : (TILE_D, TILE_S)   bf16
    x_ref      : (TILE_S, F_in_p)   bf16
    w_ref      : (F_in_p, F_out_p)  bf16
    invdeg_ref : (TILE_D, 1)        f32
    bsum_ref   : (1, F_out_p)       f32
    o_ref      : (TILE_D, F_out_p)
    ax_ref     : (TILE_D, F_in_p)   f32   A@X partial accumulator
    acc_ref    : (TILE_D, F_out_p)  f32   relation-sum accumulator
    """
    r = pl.program_id(1)
    s = pl.program_id(2)
    last_r = pl.num_programs(1) - 1
    last_s = pl.num_programs(2) - 1

    @pl.when(jnp.logical_and(r == 0, s == 0))
    def _():
        acc_ref[...] = jnp.broadcast_to(bsum_ref[...], acc_ref.shape)

    @pl.when(s == 0)
    def _():
        ax_ref[...] = jnp.zeros_like(ax_ref)

    ax_ref[...] += jnp.dot(a_ref[...], x_ref[...], preferred_element_type=jnp.float32)

    @pl.when(s == last_s)
    def _():
        msg = jnp.dot(ax_ref[...].astype(jnp.bfloat16), w_ref[...],
                      preferred_element_type=jnp.float32)
        acc_ref[...] += invdeg_ref[...] * msg

    @pl.when(jnp.logical_and(r == last_r, s == last_s))
    def _():
        o_ref[...] = acc_ref[...].astype(o_ref.dtype)


def rgcn_layer(adj, x, w, b, *, out_dtype=jnp.float32,
               dst_tile_cap=512, src_tile_cap=512, force_path=None):
    """One HeteroGraphConv(GraphConv(norm='right'), aggregate='sum') layer.

    adj : (R, N_dst, N_src) dense 0/1 block adjacency
    x   : (N_src, F_in)     source-node features (f32 or bf16)
    w   : (R, F_in, F_out)  per-relation weights
    b   : (R, 1, F_out)     per-relation biases
    returns (N_dst, F_out) with dtype `out_dtype`
    """
    R, n_dst, n_src = adj.shape
    f_in, f_out = int(w.shape[1]), int(w.shape[2])

    # --- host/XLA-side prep: degree normalization as a small f32 side input ---
    adj_f = adj.astype(jnp.float32)
    inv_deg = 1.0 / jnp.maximum(jnp.sum(adj_f, axis=-1, keepdims=True), 1.0)  # (R, N_dst, 1)
    b_sum = jnp.sum(b.astype(jnp.float32), axis=0).reshape(1, f_out)

    # --- tiling: lane-dense feature dims, bounded dst/src tiles ---
    f_in_p = _round_up(f_in, _LANE)
    f_out_p = _round_up(f_out, _LANE)

    dst_tile = min(_round_up(n_dst, _SUBLANE), dst_tile_cap)
    # Give the "parallel" dst axis >= 2 iterations when possible (v7x: 2 TCs/chip).
    if n_dst > _SUBLANE and _round_up(n_dst, dst_tile) // dst_tile < 2:
        dst_tile = _round_up((n_dst + 1) // 2, _SUBLANE)
    n_dst_p = _round_up(n_dst, dst_tile)
    n_dst_tiles = n_dst_p // dst_tile

    src_tile = min(_round_up(n_src, _LANE), src_tile_cap)
    n_src_p = _round_up(n_src, src_tile)
    n_src_tiles = n_src_p // src_tile

    a_p = jnp.pad(adj_f, ((0, 0), (0, n_dst_p - n_dst), (0, n_src_p - n_src))
                  ).astype(jnp.bfloat16)
    invdeg_p = jnp.pad(inv_deg, ((0, 0), (0, n_dst_p - n_dst), (0, 0)))
    b_p = jnp.pad(b_sum, ((0, 0), (0, f_out_p - f_out)))

    # --- static contraction-order choice (padded MXU FLOPs; XW hoist counted once) ---
    cost_xw = R * n_src_p * f_in_p * f_out_p + R * n_dst_p * n_src_p * f_out_p
    cost_ax = R * n_dst_p * n_src_p * f_in_p + R * n_dst_p * f_in_p * f_out_p
    use_xw = (cost_xw < cost_ax) if force_path is None else (force_path == "xw")

    out_bytes = jnp.dtype(out_dtype).itemsize
    try:
        vmem_cap = int(pltpu.get_tpu_info().vmem_capacity_bytes)
    except Exception:  # conservative fallback (v7x per-core size)
        vmem_cap = 64 * 1024 * 1024
    vmem_cap_use = int(0.8 * vmem_cap)   # leave headroom for Mosaic internals

    dims = ("parallel", "arbitrary", "arbitrary")
    grid = (n_dst_tiles, R, n_src_tiles)
    out_shape = jax.ShapeDtypeStruct((n_dst_p, f_out_p), out_dtype)
    out_spec = pl.BlockSpec((dst_tile, f_out_p), lambda d, r, s: (d, 0))
    a_spec = pl.BlockSpec((pl.Squeezed(), dst_tile, src_tile),
                          lambda d, r, s: (r, d, s))
    invdeg_spec = pl.BlockSpec((pl.Squeezed(), dst_tile, 1),
                               lambda d, r, s: (r, d, 0))
    bsum_spec = pl.BlockSpec((1, f_out_p), lambda d, r, s: (0, 0))

    if use_xw:
        # Hoist X @ W out of the grid: one lane-dense matmul against concat_r(W_r)
        # (computed once by XLA), so the kernel only streams A and XW.
        w_cat = jnp.transpose(w.astype(jnp.float32), (1, 0, 2)).reshape(f_in, R * f_out)
        xw = jnp.dot(x.astype(jnp.float32), w_cat)                  # (N_src, R*F_out)
        xw = jnp.transpose(xw.reshape(n_src, R, f_out), (1, 0, 2))  # (R, N_src, F_out)
        xw_p = jnp.pad(xw, ((0, 0), (0, n_src_p - n_src), (0, f_out_p - f_out))
                       ).astype(jnp.bfloat16)

        per_step = (2 * dst_tile * src_tile * 2              # A (double-buffered bf16)
                    + 2 * src_tile * f_out_p * 2             # XW
                    + 2 * dst_tile * 1 * 4                   # inv_deg
                    + 2 * 1 * f_out_p * 4                    # b_sum
                    + 2 * dst_tile * f_out_p * out_bytes     # output block
                    + dst_tile * f_out_p * 4                 # acc scratch
                    + 2 * dst_tile * f_out_p * 4)            # msg / scaled f32 temps
        vmem_limit = int(min(max(2 * per_step, 32 * 1024 * 1024), vmem_cap_use))

        out_p = pl.pallas_call(
            _rgcn_xw_kernel,
            out_shape=out_shape,
            grid_spec=pltpu.PrefetchScalarGridSpec(
                num_scalar_prefetch=0,
                grid=grid,
                in_specs=[
                    a_spec,
                    pl.BlockSpec((pl.Squeezed(), src_tile, f_out_p),
                                 lambda d, r, s: (r, s, 0)),
                    invdeg_spec,
                    bsum_spec,
                ],
                out_specs=out_spec,
                scratch_shapes=[pltpu.VMEM((dst_tile, f_out_p), jnp.float32)],
            ),
            compiler_params=pltpu.CompilerParams(
                dimension_semantics=dims, vmem_limit_bytes=vmem_limit),
        )(a_p, xw_p, invdeg_p, b_p)
    else:
        x_p = jnp.pad(x, ((0, n_src_p - n_src), (0, f_in_p - f_in))
                      ).astype(jnp.bfloat16)
        w_p = jnp.pad(w.astype(jnp.float32),
                      ((0, 0), (0, f_in_p - f_in), (0, f_out_p - f_out))
                      ).astype(jnp.bfloat16)

        per_step = (2 * dst_tile * src_tile * 2              # A
                    + 2 * src_tile * f_in_p * 2              # X
                    + 2 * f_in_p * f_out_p * 2               # W_r
                    + 2 * dst_tile * 1 * 4                   # inv_deg
                    + 2 * 1 * f_out_p * 4                    # b_sum
                    + 2 * dst_tile * f_out_p * out_bytes     # output block
                    + dst_tile * f_in_p * 4                  # A@X scratch
                    + dst_tile * f_out_p * 4                 # acc scratch
                    + dst_tile * f_in_p * (4 + 2)            # A@X temp + bf16 cast
                    + 2 * dst_tile * f_out_p * 4)            # msg / scaled f32 temps
        vmem_limit = int(min(max(2 * per_step, 32 * 1024 * 1024), vmem_cap_use))

        out_p = pl.pallas_call(
            _rgcn_ax_kernel,
            out_shape=out_shape,
            grid_spec=pltpu.PrefetchScalarGridSpec(
                num_scalar_prefetch=0,
                grid=grid,
                in_specs=[
                    a_spec,
                    pl.BlockSpec((src_tile, f_in_p), lambda d, r, s: (s, 0)),
                    pl.BlockSpec((pl.Squeezed(), f_in_p, f_out_p),
                                 lambda d, r, s: (r, 0, 0)),
                    invdeg_spec,
                    bsum_spec,
                ],
                out_specs=out_spec,
                scratch_shapes=[pltpu.VMEM((dst_tile, f_in_p), jnp.float32),
                                pltpu.VMEM((dst_tile, f_out_p), jnp.float32)],
            ),
            compiler_params=pltpu.CompilerParams(
                dimension_semantics=dims, vmem_limit_bytes=vmem_limit),
        )(a_p, x_p, w_p, invdeg_p, b_p)

    return out_p[:n_dst, :f_out]


@jax.jit
def stochastic_two_layer_rgcn(adj0, adj1, x, w1, b1, w2, b2):
    # conv1(blocks[0], x): bf16 output halves the inter-layer HBM round trip.
    h = rgcn_layer(adj0, x, w1, b1, out_dtype=jnp.bfloat16)
    # conv2(blocks[1], h): consumes bf16 h directly (no activation, as in the module).
    return rgcn_layer(adj1, h, w2, b2, out_dtype=jnp.float32)


def _reference_layer(adj, x, w, b):
    # Pure-JAX f32 reference of one layer (for verification).
    xw = jnp.einsum("sf,rfo->rso", x.astype(jnp.float32), w.astype(jnp.float32))
    msg = jnp.einsum("rds,rso->rdo", adj.astype(jnp.float32), xw)
    deg = jnp.maximum(jnp.sum(adj.astype(jnp.float32), axis=-1, keepdims=True), 1.0)
    return jnp.sum(msg / deg + b.astype(jnp.float32), axis=0)


if __name__ == "__main__":
    key = jax.random.PRNGKey(0)

    # Small synthetic problem: R relations, two message-flow-graph "blocks".
    R = 3
    n_src0, n_dst0, n_dst1 = 64, 32, 16
    in_feat, hidden_feat, out_feat = 16, 32, 8

    k = jax.random.split(key, 8)
    x = jax.random.normal(k[0], (n_src0, in_feat), dtype=jnp.float32)

    # Deterministic synthetic parameters (GraphConv weight + bias per relation).
    w1 = 0.1 * jax.random.normal(k[1], (R, in_feat, hidden_feat), dtype=jnp.float32)
    b1 = 0.1 * jax.random.normal(k[2], (R, 1, hidden_feat), dtype=jnp.float32)
    w2 = 0.1 * jax.random.normal(k[3], (R, hidden_feat, out_feat), dtype=jnp.float32)
    b2 = 0.1 * jax.random.normal(k[4], (R, 1, out_feat), dtype=jnp.float32)

    # Dense random block adjacencies (dst x src) per relation.
    adj0 = jax.random.bernoulli(k[5], 0.2, (R, n_dst0, n_src0)).astype(jnp.float32)
    adj1 = jax.random.bernoulli(k[6], 0.2, (R, n_dst1, n_dst0)).astype(jnp.float32)

    out = jax.block_until_ready(
        stochastic_two_layer_rgcn(adj0, adj1, x, w1, b1, w2, b2))

    # Verify against a pure-JAX f32 reference (kernel uses bf16 operands, f32 accumulate,
    # bf16 inter-layer activation).
    ref_h = _reference_layer(adj0, x, w1, b1)
    ref = _reference_layer(adj1, ref_h, w2, b2)
    assert out.shape == (n_dst1, out_feat)
    assert jnp.allclose(out, ref, atol=2e-2, rtol=2e-2), "mismatch vs reference (2-layer)"

    # Also exercise + verify the hoisted-XW kernel path (the cost model picks the
    # A@X-first path at these tiny shapes).
    h_xw = jax.block_until_ready(
        rgcn_layer(adj0, x, w1, b1, out_dtype=jnp.float32, force_path="xw"))
    assert jnp.allclose(h_xw, ref_h, atol=2e-2, rtol=2e-2), "mismatch vs reference (xw path)"

    print("KERNEL_OK")
</pallas_src>

<mosaic_0001>
module attributes {stable_mosaic.version = 11 : i64} {
  func.func @_rgcn_ax_kernel(%arg0: i32, %arg1: i32, %arg2: i32, %arg3: memref<1x16x128xbf16, #tpu.memory_space<vmem>>, %arg4: memref<128x128xbf16, #tpu.memory_space<vmem>>, %arg5: memref<1x128x128xbf16, #tpu.memory_space<vmem>>, %arg6: memref<1x16x1xf32, #tpu.memory_space<vmem>>, %arg7: memref<1x128xf32, #tpu.memory_space<vmem>>, %arg8: memref<16x128xbf16, #tpu.memory_space<vmem>>, %arg9: memref<16x128xf32, #tpu.memory_space<vmem>>, %arg10: memref<16x128xf32, #tpu.memory_space<vmem>>) attributes {dimension_semantics = [#tpu.dimension_semantics<parallel>, #tpu.dimension_semantics<arbitrary>, #tpu.dimension_semantics<arbitrary>], iteration_bounds = array<i64: 2, 3, 1>, scalar_prefetch = 0 : i64, scratch_operands = 2 : i64, tpu.core_type = #tpu.core_type<tc>, window_params = [{transform_indices = @transform_0, window_bounds = array<i64: 1, 16, 128>}, {transform_indices = @transform_1, window_bounds = array<i64: 128, 128>}, {transform_indices = @transform_2, window_bounds = array<i64: 1, 128, 128>}, {transform_indices = @transform_3, window_bounds = array<i64: 1, 16, 1>}, {pipeline_mode = #tpu.pipeline_mode<synchronous>, transform_indices = @transform_4, window_bounds = array<i64: 1, 128>}, {transform_indices = @transform_5, window_bounds = array<i64: 16, 128>}]} {
    %c0_i32 = arith.constant 0 : i32
    %0 = arith.cmpi eq, %arg1, %c0_i32 : i32
    %c0_i32_0 = arith.constant 0 : i32
    %1 = arith.cmpi eq, %arg2, %c0_i32_0 : i32
    %2 = arith.andi %0, %1 : i1
    %3 = arith.extui %2 : i1 to i32
    %c0_i32_1 = arith.constant 0 : i32
    %4 = arith.cmpi ne, %3, %c0_i32_1 : i32
    scf.if %4 {
      %c0_16 = arith.constant 0 : index
      %c0_17 = arith.constant 0 : index
      %23 = vector.load %arg7[%c0_16, %c0_17] : memref<1x128xf32, #tpu.memory_space<vmem>>, vector<1x128xf32>
      %24 = vector.shape_cast %23 : vector<1x128xf32> to vector<1x128xf32>
      %25 = vector.broadcast %24 : vector<1x128xf32> to vector<16x128xf32>
      %c0_18 = arith.constant 0 : index
      %c0_19 = arith.constant 0 : index
      %26 = vector.load %arg10[%c0_18, %c0_19] : memref<16x128xf32, #tpu.memory_space<vmem>>, vector<16x128xf32>
      tpu.vector_store %arg10[%c0_18, %c0_19], %25 {strides = array<i32>} : memref<16x128xf32, #tpu.memory_space<vmem>>, vector<16x128xf32>,
    } else {
    }
    %c0_i32_2 = arith.constant 0 : i32
    %5 = arith.cmpi eq, %arg2, %c0_i32_2 : i32
    %6 = arith.extui %5 : i1 to i32
    %c0_i32_3 = arith.constant 0 : i32
    %7 = arith.cmpi ne, %6, %c0_i32_3 : i32
    scf.if %7 {
      %cst_16 = arith.constant 0.000000e+00 : f32
      %23 = vector.broadcast %cst_16 : f32 to vector<16x128xf32>
      %c0_17 = arith.constant 0 : index
      %c0_18 = arith.constant 0 : index
      %24 = vector.load %arg9[%c0_17, %c0_18] : memref<16x128xf32, #tpu.memory_space<vmem>>, vector<16x128xf32>
      tpu.vector_store %arg9[%c0_17, %c0_18], %23 {strides = array<i32>} : memref<16x128xf32, #tpu.memory_space<vmem>>, vector<16x128xf32>,
    } else {
    }
    %c0 = arith.constant 0 : index
    %c0_4 = arith.constant 0 : index
    %8 = vector.load %arg9[%c0, %c0_4] : memref<16x128xf32, #tpu.memory_space<vmem>>, vector<16x128xf32>
    %c0_5 = arith.constant 0 : index
    %c0_6 = arith.constant 0 : index
    %c0_7 = arith.constant 0 : index
    %9 = vector.load %arg3[%c0_5, %c0_6, %c0_7] : memref<1x16x128xbf16, #tpu.memory_space<vmem>>, vector<1x16x128xbf16>
    %10 = vector.shape_cast %9 : vector<1x16x128xbf16> to vector<16x128xbf16>
    %c0_8 = arith.constant 0 : index
    %c0_9 = arith.constant 0 : index
    %11 = vector.load %arg4[%c0_8, %c0_9] : memref<128x128xbf16, #tpu.memory_space<vmem>>, vector<128x128xbf16>
    %cst = arith.constant dense<0.000000e+00> : vector<16x128xf32>
    %12 = tpu.matmul %10, %11, %cst {dimension_numbers = #tpu.dot_dimension_numbers<[1], [0], [0], [1], [0, 0, 1, 1], [], []>} : vector<16x128xbf16>, vector<128x128xbf16>, vector<16x128xf32> -> vector<16x128xf32>
    %13 = arith.addf %8, %12 : vector<16x128xf32>
    %c0_10 = arith.constant 0 : index
    %c0_11 = arith.constant 0 : index
    %14 = vector.load %arg9[%c0_10, %c0_11] : memref<16x128xf32, #tpu.memory_space<vmem>>, vector<16x128xf32>
    tpu.vector_store %arg9[%c0_10, %c0_11], %13 {strides = array<i32>} : memref<16x128xf32, #tpu.memory_space<vmem>>, vector<16x128xf32>,
    %c0_i32_12 = arith.constant 0 : i32
    %15 = arith.cmpi eq, %arg2, %c0_i32_12 : i32
    %16 = arith.extui %15 : i1 to i32
    %c0_i32_13 = arith.constant 0 : i32
    %17 = arith.cmpi ne, %16, %c0_i32_13 : i32
    scf.if %17 {
      %c0_16 = arith.constant 0 : index
      %c0_17 = arith.constant 0 : index
      %23 = vector.load %arg9[%c0_16, %c0_17] : memref<16x128xf32, #tpu.memory_space<vmem>>, vector<16x128xf32>
      %24 = arith.truncf %23 : vector<16x128xf32> to vector<16x128xbf16>
      %c0_18 = arith.constant 0 : index
      %c0_19 = arith.constant 0 : index
      %c0_20 = arith.constant 0 : index
      %25 = vector.load %arg5[%c0_18, %c0_19, %c0_20] : memref<1x128x128xbf16, #tpu.memory_space<vmem>>, vector<1x128x128xbf16>
      %26 = vector.shape_cast %25 : vector<1x128x128xbf16> to vector<128x128xbf16>
      %cst_21 = arith.constant dense<0.000000e+00> : vector<16x128xf32>
      %27 = tpu.matmul %24, %26, %cst_21 {dimension_numbers = #tpu.dot_dimension_numbers<[1], [0], [0], [1], [0, 0, 1, 1], [], []>} : vector<16x128xbf16>, vector<128x128xbf16>, vector<16x128xf32> -> vector<16x128xf32>
      %c0_22 = arith.constant 0 : index
      %c0_23 = arith.constant 0 : index
      %28 = vector.load %arg10[%c0_22, %c0_23] : memref<16x128xf32, #tpu.memory_space<vmem>>, vector<16x128xf32>
      %c0_24 = arith.constant 0 : index
      %c0_25 = arith.constant 0 : index
      %c0_26 = arith.constant 0 : index
      %29 = vector.load %arg6[%c0_24, %c0_25, %c0_26] : memref<1x16x1xf32, #tpu.memory_space<vmem>>, vector<1x16x1xf32>
      %30 = vector.shape_cast %29 : vector<1x16x1xf32> to vector<16x1xf32>
      %31 = vector.broadcast %30 : vector<16x1xf32> to vector<16x128xf32>
      %32 = arith.mulf %31, %27 : vector<16x128xf32>
      %33 = arith.addf %28, %32 : vector<16x128xf32>
      %c0_27 = arith.constant 0 : index
      %c0_28 = arith.constant 0 : index
      %34 = vector.load %arg10[%c0_27, %c0_28] : memref<16x128xf32, #tpu.memory_space<vmem>>, vector<16x128xf32>
      tpu.vector_store %arg10[%c0_27, %c0_28], %33 {strides = array<i32>} : memref<16x128xf32, #tpu.memory_space<vmem>>, vector<16x128xf32>,
    } else {
    }
    %c2_i32 = arith.constant 2 : i32
    %18 = arith.cmpi eq, %arg1, %c2_i32 : i32
    %c0_i32_14 = arith.constant 0 : i32
    %19 = arith.cmpi eq, %arg2, %c0_i32_14 : i32
    %20 = arith.andi %18, %19 : i1
    %21 = arith.extui %20 : i1 to i32
    %c0_i32_15 = arith.constant 0 : i32
    %22 = arith.cmpi ne, %21, %c0_i32_15 : i32
    scf.if %22 {
      %c0_16 = arith.constant 0 : index
      %c0_17 = arith.constant 0 : index
      %23 = vector.load %arg10[%c0_16, %c0_17] : memref<16x128xf32, #tpu.memory_space<vmem>>, vector<16x128xf32>
      %24 = arith.truncf %23 : vector<16x128xf32> to vector<16x128xbf16>
      %c0_18 = arith.constant 0 : index
      %c0_19 = arith.constant 0 : index
      %25 = vector.load %arg8[%c0_18, %c0_19] : memref<16x128xbf16, #tpu.memory_space<vmem>>, vector<16x128xbf16>
      tpu.vector_store %arg8[%c0_18, %c0_19], %24 {strides = array<i32>} : memref<16x128xbf16, #tpu.memory_space<vmem>>, vector<16x128xbf16>,
    } else {
    }
    return
  }
  func.func @transform_0(%arg0: i32, %arg1: i32, %arg2: i32) -> (i32, i32, i32) {
    %c0_i32 = arith.constant 0 : i32
    return %arg1, %arg0, %arg2 : i32, i32, i32
  }
  func.func @transform_1(%arg0: i32, %arg1: i32, %arg2: i32) -> (i32, i32) {
    %c0_i32 = arith.constant 0 : i32
    %c0_i32_0 = arith.constant 0 : i32
    return %arg2, %c0_i32 : i32, i32
  }
  func.func @transform_2(%arg0: i32, %arg1: i32, %arg2: i32) -> (i32, i32, i32) {
    %c0_i32 = arith.constant 0 : i32
    %c0_i32_0 = arith.constant 0 : i32
    %c0_i32_1 = arith.constant 0 : i32
    return %arg1, %c0_i32, %c0_i32_0 : i32, i32, i32
  }
  func.func @transform_3(%arg0: i32, %arg1: i32, %arg2: i32) -> (i32, i32, i32) {
    %c0_i32 = arith.constant 0 : i32
    %c0_i32_0 = arith.constant 0 : i32
    return %arg1, %arg0, %c0_i32 : i32, i32, i32
  }
  func.func @transform_4(%arg0: i32, %arg1: i32, %arg2: i32) -> (i32, i32) {
    %c0_i32 = arith.constant 0 : i32
    %c0_i32_0 = arith.constant 0 : i32
    %c0_i32_1 = arith.constant 0 : i32
    return %c0_i32, %c0_i32_0 : i32, i32
  }
  func.func @transform_5(%arg0: i32, %arg1: i32, %arg2: i32) -> (i32, i32) {
    %c0_i32 = arith.constant 0 : i32
    %c0_i32_0 = arith.constant 0 : i32
    return %arg0, %c0_i32 : i32, i32
  }
}

module attributes {stable_mosaic.version = 11 : i64} {
  func.func @_rgcn_ax_kernel(%arg0: i32, %arg1: i32, %arg2: i32, %arg3: memref<1x8x128xbf16, #tpu.memory_space<vmem>>, %arg4: memref<128x128xbf16, #tpu.memory_space<vmem>>, %arg5: memref<1x128x128xbf16, #tpu.memory_space<vmem>>, %arg6: memref<1x8x1xf32, #tpu.memory_space<vmem>>, %arg7: memref<1x128xf32, #tpu.memory_space<vmem>>, %arg8: memref<8x128xf32, #tpu.memory_space<vmem>>, %arg9: memref<8x128xf32, #tpu.memory_space<vmem>>, %arg10: memref<8x128xf32, #tpu.memory_space<vmem>>) attributes {dimension_semantics = [#tpu.dimension_semantics<parallel>, #tpu.dimension_semantics<arbitrary>, #tpu.dimension_semantics<arbitrary>], iteration_bounds = array<i64: 2, 3, 1>, scalar_prefetch = 0 : i64, scratch_operands = 2 : i64, tpu.core_type = #tpu.core_type<tc>, window_params = [{transform_indices = @transform_0, window_bounds = array<i64: 1, 8, 128>}, {transform_indices = @transform_1, window_bounds = array<i64: 128, 128>}, {transform_indices = @transform_2, window_bounds = array<i64: 1, 128, 128>}, {transform_indices = @transform_3, window_bounds = array<i64: 1, 8, 1>}, {pipeline_mode = #tpu.pipeline_mode<synchronous>, transform_indices = @transform_4, window_bounds = array<i64: 1, 128>}, {transform_indices = @transform_5, window_bounds = array<i64: 8, 128>}]} {
    %c0_i32 = arith.constant 0 : i32
    %0 = arith.cmpi eq, %arg1, %c0_i32 : i32
    %c0_i32_0 = arith.constant 0 : i32
    %1 = arith.cmpi eq, %arg2, %c0_i32_0 : i32
    %2 = arith.andi %0, %1 : i1
    %3 = arith.extui %2 : i1 to i32
    %c0_i32_1 = arith.constant 0 : i32
    %4 = arith.cmpi ne, %3, %c0_i32_1 : i32
    scf.if %4 {
      %c0_16 = arith.constant 0 : index
      %c0_17 = arith.constant 0 : index
      %23 = vector.load %arg7[%c0_16, %c0_17] : memref<1x128xf32, #tpu.memory_space<vmem>>, vector<1x128xf32>
      %24 = vector.shape_cast %23 : vector<1x128xf32> to vector<1x128xf32>
      %25 = vector.broadcast %24 : vector<1x128xf32> to vector<8x128xf32>
      %c0_18 = arith.constant 0 : index
      %c0_19 = arith.constant 0 : index
      %26 = vector.load %arg10[%c0_18, %c0_19] : memref<8x128xf32, #tpu.memory_space<vmem>>, vector<8x128xf32>
      tpu.vector_store %arg10[%c0_18, %c0_19], %25 {strides = array<i32>} : memref<8x128xf32, #tpu.memory_space<vmem>>, vector<8x128xf32>,
    } else {
    }
    %c0_i32_2 = arith.constant 0 : i32
    %5 = arith.cmpi eq, %arg2, %c0_i32_2 : i32
    %6 = arith.extui %5 : i1 to i32
    %c0_i32_3 = arith.constant 0 : i32
    %7 = arith.cmpi ne, %6, %c0_i32_3 : i32
    scf.if %7 {
      %cst_16 = arith.constant 0.000000e+00 : f32
      %23 = vector.broadcast %cst_16 : f32 to vector<8x128xf32>
      %c0_17 = arith.constant 0 : index
      %c0_18 = arith.constant 0 : index
      %24 = vector.load %arg9[%c0_17, %c0_18] : memref<8x128xf32, #tpu.memory_space<vmem>>, vector<8x128xf32>
      tpu.vector_store %arg9[%c0_17, %c0_18], %23 {strides = array<i32>} : memref<8x128xf32, #tpu.memory_space<vmem>>, vector<8x128xf32>,
    } else {
    }
    %c0 = arith.constant 0 : index
    %c0_4 = arith.constant 0 : index
    %8 = vector.load %arg9[%c0, %c0_4] : memref<8x128xf32, #tpu.memory_space<vmem>>, vector<8x128xf32>
    %c0_5 = arith.constant 0 : index
    %c0_6 = arith.constant 0 : index
    %c0_7 = arith.constant 0 : index
    %9 = vector.load %arg3[%c0_5, %c0_6, %c0_7] : memref<1x8x128xbf16, #tpu.memory_space<vmem>>, vector<1x8x128xbf16>
    %10 = vector.shape_cast %9 : vector<1x8x128xbf16> to vector<8x128xbf16>
    %c0_8 = arith.constant 0 : index
    %c0_9 = arith.constant 0 : index
    %11 = vector.load %arg4[%c0_8, %c0_9] : memref<128x128xbf16, #tpu.memory_space<vmem>>, vector<128x128xbf16>
    %cst = arith.constant dense<0.000000e+00> : vector<8x128xf32>
    %12 = tpu.matmul %10, %11, %cst {dimension_numbers = #tpu.dot_dimension_numbers<[1], [0], [0], [1], [0, 0, 1, 1], [], []>} : vector<8x128xbf16>, vector<128x128xbf16>, vector<8x128xf32> -> vector<8x128xf32>
    %13 = arith.addf %8, %12 : vector<8x128xf32>
    %c0_10 = arith.constant 0 : index
    %c0_11 = arith.constant 0 : index
    %14 = vector.load %arg9[%c0_10, %c0_11] : memref<8x128xf32, #tpu.memory_space<vmem>>, vector<8x128xf32>
    tpu.vector_store %arg9[%c0_10, %c0_11], %13 {strides = array<i32>} : memref<8x128xf32, #tpu.memory_space<vmem>>, vector<8x128xf32>,
    %c0_i32_12 = arith.constant 0 : i32
    %15 = arith.cmpi eq, %arg2, %c0_i32_12 : i32
    %16 = arith.extui %15 : i1 to i32
    %c0_i32_13 = arith.constant 0 : i32
    %17 = arith.cmpi ne, %16, %c0_i32_13 : i32
    scf.if %17 {
      %c0_16 = arith.constant 0 : index
      %c0_17 = arith.constant 0 : index
      %23 = vector.load %arg9[%c0_16, %c0_17] : memref<8x128xf32, #tpu.memory_space<vmem>>, vector<8x128xf32>
      %24 = arith.truncf %23 : vector<8x128xf32> to vector<8x128xbf16>
      %c0_18 = arith.constant 0 : index
      %c0_19 = arith.constant 0 : index
      %c0_20 = arith.constant 0 : index
      %25 = vector.load %arg5[%c0_18, %c0_19, %c0_20] : memref<1x128x128xbf16, #tpu.memory_space<vmem>>, vector<1x128x128xbf16>
      %26 = vector.shape_cast %25 : vector<1x128x128xbf16> to vector<128x128xbf16>
      %cst_21 = arith.constant dense<0.000000e+00> : vector<8x128xf32>
      %27 = tpu.matmul %24, %26, %cst_21 {dimension_numbers = #tpu.dot_dimension_numbers<[1], [0], [0], [1], [0, 0, 1, 1], [], []>} : vector<8x128xbf16>, vector<128x128xbf16>, vector<8x128xf32> -> vector<8x128xf32>
      %c0_22 = arith.constant 0 : index
      %c0_23 = arith.constant 0 : index
      %28 = vector.load %arg10[%c0_22, %c0_23] : memref<8x128xf32, #tpu.memory_space<vmem>>, vector<8x128xf32>
      %c0_24 = arith.constant 0 : index
      %c0_25 = arith.constant 0 : index
      %c0_26 = arith.constant 0 : index
      %29 = vector.load %arg6[%c0_24, %c0_25, %c0_26] : memref<1x8x1xf32, #tpu.memory_space<vmem>>, vector<1x8x1xf32>
      %30 = vector.shape_cast %29 : vector<1x8x1xf32> to vector<8x1xf32>
      %31 = vector.broadcast %30 : vector<8x1xf32> to vector<8x128xf32>
      %32 = arith.mulf %31, %27 : vector<8x128xf32>
      %33 = arith.addf %28, %32 : vector<8x128xf32>
      %c0_27 = arith.constant 0 : index
      %c0_28 = arith.constant 0 : index
      %34 = vector.load %arg10[%c0_27, %c0_28] : memref<8x128xf32, #tpu.memory_space<vmem>>, vector<8x128xf32>
      tpu.vector_store %arg10[%c0_27, %c0_28], %33 {strides = array<i32>} : memref<8x128xf32, #tpu.memory_space<vmem>>, vector<8x128xf32>,
    } else {
    }
    %c2_i32 = arith.constant 2 : i32
    %18 = arith.cmpi eq, %arg1, %c2_i32 : i32
    %c0_i32_14 = arith.constant 0 : i32
    %19 = arith.cmpi eq, %arg2, %c0_i32_14 : i32
    %20 = arith.andi %18, %19 : i1
    %21 = arith.extui %20 : i1 to i32
    %c0_i32_15 = arith.constant 0 : i32
    %22 = arith.cmpi ne, %21, %c0_i32_15 : i32
    scf.if %22 {
      %c0_16 = arith.constant 0 : index
      %c0_17 = arith.constant 0 : index
      %23 = vector.load %arg10[%c0_16, %c0_17] : memref<8x128xf32, #tpu.memory_space<vmem>>, vector<8x128xf32>
      %c0_18 = arith.constant 0 : index
      %c0_19 = arith.constant 0 : index
      %24 = vector.load %arg8[%c0_18, %c0_19] : memref<8x128xf32, #tpu.memory_space<vmem>>, vector<8x128xf32>
      tpu.vector_store %arg8[%c0_18, %c0_19], %23 {strides = array<i32>} : memref<8x128xf32, #tpu.memory_space<vmem>>, vector<8x128xf32>,
    } else {
    }
    return
  }
  func.func @transform_0(%arg0: i32, %arg1: i32, %arg2: i32) -> (i32, i32, i32) {
    %c0_i32 = arith.constant 0 : i32
    return %arg1, %arg0, %arg2 : i32, i32, i32
  }
  func.func @transform_1(%arg0: i32, %arg1: i32, %arg2: i32) -> (i32, i32) {
    %c0_i32 = arith.constant 0 : i32
    %c0_i32_0 = arith.constant 0 : i32
    return %arg2, %c0_i32 : i32, i32
  }
  func.func @transform_2(%arg0: i32, %arg1: i32, %arg2: i32) -> (i32, i32, i32) {
    %c0_i32 = arith.constant 0 : i32
    %c0_i32_0 = arith.constant 0 : i32
    %c0_i32_1 = arith.constant 0 : i32
    return %arg1, %c0_i32, %c0_i32_0 : i32, i32, i32
  }
  func.func @transform_3(%arg0: i32, %arg1: i32, %arg2: i32) -> (i32, i32, i32) {
    %c0_i32 = arith.constant 0 : i32
    %c0_i32_0 = arith.constant 0 : i32
    return %arg1, %arg0, %c0_i32 : i32, i32, i32
  }
  func.func @transform_4(%arg0: i32, %arg1: i32, %arg2: i32) -> (i32, i32) {
    %c0_i32 = arith.constant 0 : i32
    %c0_i32_0 = arith.constant 0 : i32
    %c0_i32_1 = arith.constant 0 : i32
    return %c0_i32, %c0_i32_0 : i32, i32
  }
  func.func @transform_5(%arg0: i32, %arg1: i32, %arg2: i32) -> (i32, i32) {
    %c0_i32 = arith.constant 0 : i32
    %c0_i32_0 = arith.constant 0 : i32
    return %arg0, %c0_i32 : i32, i32
  }
}

</mosaic_0001>

<llo_original>
// kernel: stochastic_two_layer_rgcn.3
$region0: #{stochastic_two_layer_rgcn.3}
  #allocation0 [shape = 'u32[]', space=smem, size = 0x4, offset = 0x4, fixed_abs, tag = 'smem constant byte address 0x4 - core index']
  #allocation1 [shape = 'u32[144,128]{1,0:T(1,128)}', space=vmem, size = 0x12000, scoped, tag = 'internal scratch']
  #allocation2 [shape = 'f32[8,128]{1,0:T(8,128)}', space=vmem, size = 0x1000, scoped, tag = 'scratch operand']
  #allocation3 [shape = 'f32[8,128]{1,0:T(8,128)}', space=vmem, size = 0x1000, scoped, tag = 'scratch operand']
  %s0 = inlined_call_operand.vmem [shape: bf16[3,16,128], index: 0, kind: input, shape index: {}]
  %s1 = inlined_call_operand.vmem [shape: bf16[128,128], index: 1, kind: input, shape index: {}]
  %s2 = inlined_call_operand.vmem [shape: bf16[3,128,128], index: 2, kind: input, shape index: {}]
  %s3 = inlined_call_operand.vmem [shape: f32[3,16,1], index: 3, kind: input, shape index: {}]
  %s4 = inlined_call_operand.vmem [shape: f32[1,128], index: 4, kind: input, shape index: {}]
  %s5 = inlined_call_operand.vmem [shape: f32[16,128], index: 5, kind: output, shape index: {}]
  %s6 = sld [smem:[#allocation0]]
  $region69: #{stochastic_two_layer_rgcn.3} parent=0
    _
  %s8 = ssub.s32 1, %s6
  %s9 = scalar_select 0, %s8, %s6
  loop: start=0, step=1, limit=8
  $region2: #{stochastic_two_layer_rgcn.3} parent=0 // loop_pre_header
    _
  $region3: #{stochastic_two_layer_rgcn.3} parent=0 // loop_header
    %s11 = sphi 0, %s15
    %p12 = scmp.ge.s32.totalorder %s11, 8
    %s18 = sphi 0, %s37
    %s19 = sphi 0, %s33
    %s20 = sphi 0, %s29
    %s21 = sphi 0, %s18
    %s22 = sphi 0, %s19
    %s23 = sphi 0, %s20
    %s24 = sphi 0, %s21
    %s25 = sphi 0, %s22
    %s26 = sphi 0, %s23
    %s44 = sphi 0, %s46
    %s47 = sphi 0, %s44
    %s48 = sphi 0, %s47
    %s64 = sphi 0, %s48
    %s70 = sphi 0, %s72
    %s73 = sphi 0, %s70
    %s74 = sphi 0, %s73
    %s90 = sphi 0, %s74
    %s96 = sphi 0, %s98
    %s99 = sphi 0, %s96
    %s100 = sphi 0, %s99
    %s116 = sphi 0, %s100
    %s124 = sphi 0, %s126
    %s127 = sphi 0, %s124
    %s128 = sphi 0, %s127
    %s144 = sphi 0, %s128
    %s148 = sphi 0, %s148
    %s150 = sphi 0, %s148
    %s151 = sphi 0, %s150
    %s165 = sphi 0, %s151
    %s171 = sphi 0, %s173
    %s174 = sphi 0, %s171
    %s175 = sphi 0, %s174
    %s191 = sphi 0, %s175
  $region4: #{stochastic_two_layer_rgcn.3} parent=0 // loop_header_branch
    %14 = sbr.rel (%p12) target = $region8
  $region5: #{stochastic_two_layer_rgcn.3} parent=0 // loop_body
    %s16 = ssub.s32 %s11, 1
    %s17 = ssub.s32 %s11, 2
    %s27 = sadd.s32 1, %s20
    %p28 = scmp.ge.s32.totalorder %s27, 1
    %s29 = scalar_select %p28, 0, %s27
    %s30 = sadd.s32 1, %s19
    %s31 = scalar_select %p28, %s30, %s19
    %p32 = scmp.ge.s32.totalorder %s31, 3
    %s33 = scalar_select %p32, 0, %s31
    %s34 = sadd.s32 1, %s18
    %s35 = scalar_select %p32, %s34, %s18
    %p36 = scmp.ge.s32.totalorder %s35, 2
    %s37 = scalar_select %p36, 0, %s35
    %s38 = ssub.s32 %s19, %s33
    %s39 = ssub.s32 %s18, %s37
    %s40 = sor.u32 %s38, %s39
    %s41 = ssub.s32 %s20, %s29
    %s42 = sor.u32 %s40, %s41
    %p43 = scmp.eq.s32.totalorder %s42, 0
    %s45 = sadd.s32 %s44, 1
    %s46 = scalar_select %p43, %s44, %s45
    %p49 = pneg %p43
    %p50 = scmp.eq.s32.totalorder %s11, 5
    %p51 = por %p49, %p50
    %p52 = scmp.ne.s32.totalorder %s44, %s47
    %p53 = scmp.eq.s32.totalorder %s11, 0
    %p54 = por %p52, %p53
    %p55 = scmp.ne.s32.totalorder %s44, %s47
    %p56 = scmp.eq.s32.totalorder %s16, 5
    %p57 = por %p55, %p56
    %p58 = scmp.ne.s32.totalorder %s47, %s48
    %p59 = scmp.eq.s32.totalorder %s16, 0
    %p60 = por %p58, %p59
    %p61 = scmp.ne.s32.totalorder %s47, %s48
    %p62 = scmp.eq.s32.totalorder %s17, 5
    %p63 = por %p61, %p62
    %p65 = scmp.ne.s32.totalorder %s48, %s64
    %p66 = scmp.eq.s32.totalorder %s17, 0
    %p67 = por %p65, %p66
    %s68 = ssub.s32 %s20, %s29
    %p69 = scmp.eq.s32.totalorder %s68, 0
    %s71 = sadd.s32 %s70, 1
    %s72 = scalar_select %p69, %s70, %s71
    %p75 = pneg %p69
    %p76 = scmp.eq.s32.totalorder %s11, 5
    %p77 = por %p75, %p76
    %p78 = scmp.ne.s32.totalorder %s70, %s73
    %p79 = scmp.eq.s32.totalorder %s11, 0
    %p80 = por %p78, %p79
    %p81 = scmp.ne.s32.totalorder %s70, %s73
    %p82 = scmp.eq.s32.totalorder %s16, 5
    %p83 = por %p81, %p82
    %p84 = scmp.ne.s32.totalorder %s73, %s74
    %p85 = scmp.eq.s32.totalorder %s16, 0
    %p86 = por %p84, %p85
    %p87 = scmp.ne.s32.totalorder %s73, %s74
    %p88 = scmp.eq.s32.totalorder %s17, 5
    %p89 = por %p87, %p88
    %p91 = scmp.ne.s32.totalorder %s74, %s90
    %p92 = scmp.eq.s32.totalorder %s17, 0
    %p93 = por %p91, %p92
    %s94 = ssub.s32 %s19, %s33
    %p95 = scmp.eq.s32.totalorder %s94, 0
    %s97 = sadd.s32 %s96, 1
    %s98 = scalar_select %p95, %s96, %s97
    %p101 = pneg %p95
    %p102 = scmp.eq.s32.totalorder %s11, 5
    %p103 = por %p101, %p102
    %p104 = scmp.ne.s32.totalorder %s96, %s99
    %p105 = scmp.eq.s32.totalorder %s11, 0
    %p106 = por %p104, %p105
    %p107 = scmp.ne.s32.totalorder %s96, %s99
    %p108 = scmp.eq.s32.totalorder %s16, 5
    %p109 = por %p107, %p108
    %p110 = scmp.ne.s32.totalorder %s99, %s100
    %p111 = scmp.eq.s32.totalorder %s16, 0
    %p112 = por %p110, %p111
    %p113 = scmp.ne.s32.totalorder %s99, %s100
    %p114 = scmp.eq.s32.totalorder %s17, 5
    %p115 = por %p113, %p114
    %p117 = scmp.ne.s32.totalorder %s100, %s116
    %p118 = scmp.eq.s32.totalorder %s17, 0
    %p119 = por %p117, %p118
    %s120 = ssub.s32 %s19, %s33
    %s121 = ssub.s32 %s18, %s37
    %s122 = sor.u32 %s120, %s121
    %p123 = scmp.eq.s32.totalorder %s122, 0
    %s125 = sadd.s32 %s124, 1
    %s126 = scalar_select %p123, %s124, %s125
    %p129 = pneg %p123
    %p130 = scmp.eq.s32.totalorder %s11, 5
    %p131 = por %p129, %p130
    %p132 = scmp.ne.s32.totalorder %s124, %s127
    %p133 = scmp.eq.s32.totalorder %s11, 0
    %p134 = por %p132, %p133
    %p135 = scmp.ne.s32.totalorder %s124, %s127
    %p136 = scmp.eq.s32.totalorder %s16, 5
    %p137 = por %p135, %p136
    %p138 = scmp.ne.s32.totalorder %s127, %s128
    %p139 = scmp.eq.s32.totalorder %s16, 0
    %p140 = por %p138, %p139
    %p141 = scmp.ne.s32.totalorder %s127, %s128
    %p142 = scmp.eq.s32.totalorder %s17, 5
    %p143 = por %p141, %p142
    %p145 = scmp.ne.s32.totalorder %s128, %s144
    %p146 = scmp.eq.s32.totalorder %s17, 0
    %p147 = por %p145, %p146
    %s149 = sadd.s32 %s148, 1
    %p152 = scmp.eq.s32.totalorder %s11, 5
    %p153 = scmp.ne.s32.totalorder %s148, %s150
    %p154 = scmp.eq.s32.totalorder %s11, 0
    %p155 = por %p153, %p154
    %p156 = scmp.ne.s32.totalorder %s148, %s150
    %p157 = scmp.eq.s32.totalorder %s16, 5
    %p158 = por %p156, %p157
    %p159 = scmp.ne.s32.totalorder %s150, %s151
    %p160 = scmp.eq.s32.totalorder %s16, 0
    %p161 = por %p159, %p160
    %p162 = scmp.ne.s32.totalorder %s150, %s151
    %p163 = scmp.eq.s32.totalorder %s17, 5
    %p164 = por %p162, %p163
    %p166 = scmp.ne.s32.totalorder %s151, %s165
    %p167 = scmp.eq.s32.totalorder %s17, 0
    %p168 = por %p166, %p167
    %s169 = ssub.s32 %s18, %s37
    %p170 = scmp.eq.s32.totalorder %s169, 0
    %s172 = sadd.s32 %s171, 1
    %s173 = scalar_select %p170, %s171, %s172
    %p176 = pneg %p170
    %p177 = scmp.eq.s32.totalorder %s11, 5
    %p178 = por %p176, %p177
    %p179 = scmp.ne.s32.totalorder %s171, %s174
    %p180 = scmp.eq.s32.totalorder %s11, 0
    %p181 = por %p179, %p180
    %p182 = scmp.ne.s32.totalorder %s171, %s174
    %p183 = scmp.eq.s32.totalorder %s16, 5
    %p184 = por %p182, %p183
    %p185 = scmp.ne.s32.totalorder %s174, %s175
    %p186 = scmp.eq.s32.totalorder %s16, 0
    %p187 = por %p185, %p186
    %p188 = scmp.ne.s32.totalorder %s174, %s175
    %p189 = scmp.eq.s32.totalorder %s17, 5
    %p190 = por %p188, %p189
    %p192 = scmp.ne.s32.totalorder %s175, %s191
    %p193 = scmp.eq.s32.totalorder %s17, 0
    %p194 = por %p192, %p193
    %p195 = scmp.le.s32.totalorder 1, %s11
    %p196 = scmp.lt.s32.totalorder %s11, 7
    %p197 = pnand %p195, %p196
    %p198 = pneg %p197
    // Predicated region
    $region9: #{stochastic_two_layer_rgcn.3} parent=5 // pred_check
      _
    $region10: #{stochastic_two_layer_rgcn.3} parent=5 // pred_check_branch
      %200 = sbr.rel (%p197) target = $region12
    $region11: #{stochastic_two_layer_rgcn.3} parent=5 // pred_region
      %s201 = ssub.s32 %s11, 1
      // Predicated region
      $region13: #{stochastic_two_layer_rgcn.3} parent=11 // pred_check
        %p202 = pneg %p86
      $region14: #{stochastic_two_layer_rgcn.3} parent=11 // pred_check_branch
        %204 = sbr.rel (%p202) target = $region16
      $region15: #{stochastic_two_layer_rgcn.3} parent=11 // pred_region
        %s205 = smul.u32 16, %s23
        %p206 = scmp.lt.s32.totalorder %s205, 15
        %s207 = scalar_select %p206, %s205, 15
        %s208 = smul.addr %s207, 4
        %s209 = scalar_lea.vmem %s1, %s208
        %s210 = smul.u32 16, %s23
      $region16: #{stochastic_two_layer_rgcn.3} parent=11 // pred_fallthru
        _
      // Predicated region
      $region17: #{stochastic_two_layer_rgcn.3} parent=11 // pred_check
        %p211 = pneg %p161
      $region18: #{stochastic_two_layer_rgcn.3} parent=11 // pred_check_branch
        %213 = sbr.rel (%p211) target = $region20
      $region19: #{stochastic_two_layer_rgcn.3} parent=11 // pred_region
        _
      $region20: #{stochastic_two_layer_rgcn.3} parent=11 // pred_fallthru
        _
    $region12: #{stochastic_two_layer_rgcn.3} parent=5 // pred_fallthru
      _
    %p214 = scmp.lt.s32.totalorder %s11, 6
    // Predicated region
    $region21: #{stochastic_two_layer_rgcn.3} parent=5 // pred_check
      %p215 = pneg %p214
    $region22: #{stochastic_two_layer_rgcn.3} parent=5 // pred_check_branch
      %217 = sbr.rel (%p215) target = $region24
    $region23: #{stochastic_two_layer_rgcn.3} parent=5 // pred_region
      // Predicated region
      $region25: #{stochastic_two_layer_rgcn.3} parent=23 // pred_check
        %p218 = pneg %p54
      $region26: #{stochastic_two_layer_rgcn.3} parent=23 // pred_check_branch
        %220 = sbr.rel (%p218) target = $region28
      $region27: #{stochastic_two_layer_rgcn.3} parent=23 // pred_region
        %p221 = scmp.lt.s32.totalorder %s19, 2
        %s222 = scalar_select %p221, %s19, 2
        %p223 = scmp.lt.s32.totalorder %s18, 1
        %s224 = scalar_select %p223, %s18, 1
        %p225 = scmp.lt.s32.totalorder %s20, 0
        %s226 = scalar_select %p225, %s20, 0
        %s227 = sadd.s32 %s226, %s224
        %s228 = smul.addr %s222, 2
        %s229 = sadd.s32 %s227, %s228
        %s230 = smul.addr %s229, 4
        %s231 = scalar_lea.vmem %s0, %s230
      $region28: #{stochastic_two_layer_rgcn.3} parent=23 // pred_fallthru
        _
      // Predicated region
      $region29: #{stochastic_two_layer_rgcn.3} parent=23 // pred_check
        %p232 = pneg %p106
      $region30: #{stochastic_two_layer_rgcn.3} parent=23 // pred_check_branch
        %234 = sbr.rel (%p232) target = $region32
      $region31: #{stochastic_two_layer_rgcn.3} parent=23 // pred_region
        %p235 = scmp.lt.s32.totalorder %s19, 2
        %s236 = scalar_select %p235, %s19, 2
        %s237 = smul.addr %s236, 16
        %s238 = smul.addr %s237, 4
        %s239 = scalar_lea.vmem %s2, %s238
      $region32: #{stochastic_two_layer_rgcn.3} parent=23 // pred_fallthru
        _
      // Predicated region
      $region33: #{stochastic_two_layer_rgcn.3} parent=23 // pred_check
        %p240 = pneg %p134
      $region34: #{stochastic_two_layer_rgcn.3} parent=23 // pred_check_branch
        %242 = sbr.rel (%p240) target = $region36
      $region35: #{stochastic_two_layer_rgcn.3} parent=23 // pred_region
        %p243 = scmp.lt.s32.totalorder %s19, 2
        %s244 = scalar_select %p243, %s19, 2
        %p245 = scmp.lt.s32.totalorder %s18, 1
        %s246 = scalar_select %p245, %s18, 1
        %s247 = smul.addr %s244, 2
        %s248 = sadd.s32 %s246, %s247
        %s249 = smul.addr %s248, 8
        %s250 = scalar_lea.vmem %s3, %s249
      $region36: #{stochastic_two_layer_rgcn.3} parent=23 // pred_fallthru
        _
    $region24: #{stochastic_two_layer_rgcn.3} parent=5 // pred_fallthru
      _
    %p251 = scmp.le.s32.totalorder 1, %s11
    %p252 = scmp.lt.s32.totalorder %s11, 7
    %p253 = pnand %p251, %p252
    %p254 = pneg %p253
    // Predicated region
    $region37: #{stochastic_two_layer_rgcn.3} parent=5 // pred_check
      _
    $region38: #{stochastic_two_layer_rgcn.3} parent=5 // pred_check_branch
      %256 = sbr.rel (%p253) target = $region40
    $region39: #{stochastic_two_layer_rgcn.3} parent=5 // pred_region
      %s257 = ssub.s32 %s11, 1
      %p258 = scmp.lt.s32.totalorder %s22, 2
      %s259 = scalar_select %p258, %s22, 2
      %p260 = scmp.lt.s32.totalorder %s21, 1
      %s261 = scalar_select %p260, %s21, 1
      %p262 = scmp.lt.s32.totalorder %s23, 0
      %s263 = scalar_select %p262, %s23, 0
      %s264 = sadd.s32 %s263, %s261
      %s265 = smul.addr %s259, 2
      %s266 = sadd.s32 %s264, %s265
      %s267 = smul.addr %s266, 4
      %s268 = scalar_lea.vmem %s0, %s267
      %p269 = pneg %p60
      %p270 = pneg %p57
      %s271 = smul.u32 16, %s23
      %p272 = scmp.lt.s32.totalorder %s271, 15
      %s273 = scalar_select %p272, %s271, 15
      %s274 = smul.addr %s273, 4
      %s275 = scalar_lea.vmem %s1, %s274
      %p276 = pneg %p86
      %p277 = pneg %p83
      %p278 = scmp.lt.s32.totalorder %s22, 2
      %s279 = scalar_select %p278, %s22, 2
      %s280 = smul.addr %s279, 16
      %s281 = smul.addr %s280, 4
      %s282 = scalar_lea.vmem %s2, %s281
      %p283 = pneg %p112
      %p284 = pneg %p109
      %p285 = scmp.lt.s32.totalorder %s22, 2
      %s286 = scalar_select %p285, %s22, 2
      %p287 = scmp.lt.s32.totalorder %s21, 1
      %s288 = scalar_select %p287, %s21, 1
      %s289 = smul.addr %s286, 2
      %s290 = sadd.s32 %s288, %s289
      %s291 = smul.addr %s290, 8
      %s292 = scalar_lea.vmem %s3, %s291
      %p293 = pneg %p140
      %p294 = pneg %p137
      %p295 = pneg %p161
      %p296 = pneg %p158
      %p297 = pneg %p187
      %p298 = pneg %p184
      %p299 = scmp.lt.s32.totalorder %s21, 1
      %s300 = scalar_select %p299, %s21, 1
      %s301 = smul.addr %s300, 8
      %s302 = scalar_lea.vmem %s5, %s301
      %p303 = scmp.lt.s32.totalorder %s22, 2
      %s304 = scalar_select %p303, %s22, 2
      %p305 = scmp.lt.s32.totalorder %s21, 1
      %s306 = scalar_select %p305, %s21, 1
      %p307 = scmp.lt.s32.totalorder %s23, 0
      %s308 = scalar_select %p307, %s23, 0
      %s309 = sadd.s32 %s308, %s306
      %s310 = smul.addr %s304, 2
      %s311 = sadd.s32 %s309, %s310
      %s312 = smul.addr %s311, 4
      %s313 = scalar_lea.vmem %s0, %s312
      %s314 = smul.u32 16, %s23
      %p315 = scmp.lt.s32.totalorder %s314, 15
      %s316 = scalar_select %p315, %s314, 15
      %s317 = smul.addr %s316, 4
      %s318 = scalar_lea.vmem %s1, %s317
      %s319 = smul.u32 16, %s23
      %p320 = scmp.lt.s32.totalorder %s22, 2
      %s321 = scalar_select %p320, %s22, 2
      %s322 = smul.addr %s321, 16
      %s323 = smul.addr %s322, 4
      %s324 = scalar_lea.vmem %s2, %s323
      %p325 = scmp.lt.s32.totalorder %s22, 2
      %s326 = scalar_select %p325, %s22, 2
      %p327 = scmp.lt.s32.totalorder %s21, 1
      %s328 = scalar_select %p327, %s21, 1
      %s329 = smul.addr %s326, 2
      %s330 = sadd.s32 %s328, %s329
      %s331 = smul.addr %s330, 8
      %s332 = scalar_lea.vmem %s3, %s331
      %p333 = scmp.lt.s32.totalorder %s21, 1
      %s334 = scalar_select %p333, %s21, 1
      %s335 = smul.addr %s334, 8
      %s336 = scalar_lea.vmem %s5, %s335
      %p338 = scmp.eq.s32.totalorder %s22, 0
      %p339 = scmp.eq.s32.totalorder %s23, 0
      %p340 = pnand %p338, %p339
      %p341 = pneg %p340
      // Predicated region
      $region41: #{stochastic_two_layer_rgcn.3} parent=39 // pred_check
        _
      $region42: #{stochastic_two_layer_rgcn.3} parent=39 // pred_check_branch
        %343 = sbr.rel (%p340) target = $region44
      $region43: #{stochastic_two_layer_rgcn.3} parent=39 // pred_region
        %v344 = vld [vmem:[%s4] sm:$0x1]
        %v346 = vlaneseq
        %v347 = vshrl.u32 %v346, 7
        %v348 = vsub.s32 0, %v347
        %v349 = vrot.slane %v344, %v348
        %351 = vst [vmem:[#allocation3] sm:$0xff] %v349
      $region44: #{stochastic_two_layer_rgcn.3} parent=39 // pred_fallthru
        _
      // Predicated region
      $region45: #{stochastic_two_layer_rgcn.3} parent=39 // pred_check
        %p352 = pneg %p339
      $region46: #{stochastic_two_layer_rgcn.3} parent=39 // pred_check_branch
        %354 = sbr.rel (%p352) target = $region48
      $region47: #{stochastic_two_layer_rgcn.3} parent=39 // pred_region
        %355 = vst [vmem:[#allocation2] sm:$0xff] 0.0
      $region48: #{stochastic_two_layer_rgcn.3} parent=39 // pred_fallthru
        _
      %v356 = vld [vmem:[#allocation2] sm:$0xff]
      %v357 = vld [vmem:[%s313] sm:$0xf]
      %v358 = vld [vmem:[%s318] sm:$0xf]
      %v359 = vld [vmem:[%s318 + $0x4] sm:$0xf]
      %v360 = vld [vmem:[%s318 + $0x8] sm:$0xf]
      %v361 = vld [vmem:[%s318 + $0xc] sm:$0xf]
      %v362 = vld [vmem:[%s318 + $0x10] sm:$0xf]
      %v363 = vld [vmem:[%s318 + $0x14] sm:$0xf]
      %v364 = vld [vmem:[%s318 + $0x18] sm:$0xf]
      %v365 = vld [vmem:[%s318 + $0x1c] sm:$0xf]
      %v366 = vld [vmem:[%s318 + $0x20] sm:$0xf]
      %v367 = vld [vmem:[%s318 + $0x24] sm:$0xf]
      %v368 = vld [vmem:[%s318 + $0x28] sm:$0xf]
      %v369 = vld [vmem:[%s318 + $0x2c] sm:$0xf]
      %v370 = vld [vmem:[%s318 + $0x30] sm:$0xf]
      %v371 = vld [vmem:[%s318 + $0x34] sm:$0xf]
      %v372 = vld [vmem:[%s318 + $0x38] sm:$0xf]
      %v373 = vld [vmem:[%s318 + $0x3c] sm:$0xf]
      %v390 = vunpack.c.l.b16 %v358
      %v391 = vunpack.c.l.b16 %v359
      %v392 = vunpack.c.l.b16 %v360
      %v393 = vunpack.c.l.b16 %v361
      %v394 = vunpack.c.l.b16 %v362
      %v395 = vunpack.c.l.b16 %v363
      %v396 = vunpack.c.l.b16 %v364
      %v397 = vunpack.c.l.b16 %v365
      %v398 = vunpack.c.l.b16 %v366
      %v399 = vunpack.c.l.b16 %v367
      %v400 = vunpack.c.l.b16 %v368
      %v401 = vunpack.c.l.b16 %v369
      %v402 = vunpack.c.l.b16 %v370
      %v403 = vunpack.c.l.b16 %v371
      %v404 = vunpack.c.l.b16 %v372
      %v405 = vunpack.c.l.b16 %v373
      %v406 = vpack.c.b16 %v391, %v390
      %v407 = vpack.c.b16 %v393, %v392
      %v408 = vpack.c.b16 %v395, %v394
      %v409 = vpack.c.b16 %v397, %v396
      %v410 = vpack.c.b16 %v399, %v398
      %v411 = vpack.c.b16 %v401, %v400
      %v412 = vpack.c.b16 %v403, %v402
      %v413 = vpack.c.b16 %v405, %v404
      %422 = vmatprep.subr.bf16.mxu0 0
      %423 = vmatpush1.bf16.msra.mxu0 %v406
      %424 = vmatprep.subr.bf16.mxu0 0
      %425 = vmatpush1.bf16.msra.mxu0 %v407
      %426 = vmatprep.subr.bf16.mxu0 0
      %427 = vmatpush1.bf16.msra.mxu0 %v408
      %428 = vmatprep.subr.bf16.mxu0 0
      %429 = vmatpush1.bf16.msra.mxu0 %v409
      %430 = vmatprep.subr.bf16.mxu0 0
      %431 = vmatpush1.bf16.msra.mxu0 %v410
      %432 = vmatprep.subr.bf16.mxu0 0
      %433 = vmatpush1.bf16.msra.mxu0 %v411
      %434 = vmatprep.subr.bf16.mxu0 0
      %435 = vmatpush1.bf16.msra.mxu0 %v412
      %436 = vmatprep.subr.bf16.mxu0 0
      %437 = vmatpush1.bf16.msra.mxu0 %v413
      %438 = vmatprep.subr.bf16.mxu0 0
      %439 = vmatpush1.bf16.msra.mxu0 0
      %440 = vmatprep.subr.bf16.mxu0 0
      %441 = vmatpush1.bf16.msra.mxu0 0
      %442 = vmatprep.subr.bf16.mxu0 0
      %443 = vmatpush1.bf16.msra.mxu0 0
      %444 = vmatprep.subr.bf16.mxu0 0
      %445 = vmatpush1.bf16.msra.mxu0 0
      %446 = vmatprep.subr.bf16.mxu0 0
      %447 = vmatpush1.bf16.msra.mxu0 0
      %448 = vmatprep.subr.bf16.mxu0 0
      %449 = vmatpush1.bf16.msra.mxu0 0
      %450 = vmatprep.subr.bf16.mxu0 0
      %451 = vmatpush1.bf16.msra.mxu0 0
      %452 = vmatprep.subr.bf16.mxu0 0
      %453 = vmatpush1.bf16.msra.mxu0 0
      %454 = vmatprep.mubr.bf16.mxu0 0
      %455 = vmatmul.mubr.bf16.gmra.mrb[0].mxu0 %v357
      %v456 = vpop.f32.mrb[0].mxu0
      %v457 = vadd.f32 0.0, %v456
      %v458 = vpop.f32.mrb[0].mxu0
      %v459 = vpop.f32.mrb[0].mxu0
      %v460 = vpop.f32.mrb[0].mxu0
      %461 = vdwg.mxu0
      %v462 = vadd.f32 %v356, %v457
      %463 = vst [vmem:[#allocation2] sm:$0xff] %v462
      // Predicated region
      $region49: #{stochastic_two_layer_rgcn.3} parent=39 // pred_check
        %p464 = pneg %p339
      $region50: #{stochastic_two_layer_rgcn.3} parent=39 // pred_check_branch
        %466 = sbr.rel (%p464) target = $region52
      $region51: #{stochastic_two_layer_rgcn.3} parent=39 // pred_region
        %v467 = vld [vmem:[#allocation2] sm:$0xff]
        %v468 = vpack.c.bf16 %v467, %v467
        %v469 = vld [vmem:[%s324] sm:$0xf]
        %v470 = vld [vmem:[%s324 + $0x4] sm:$0xf]
        %v471 = vld [vmem:[%s324 + $0x8] sm:$0xf]
        %v472 = vld [vmem:[%s324 + $0xc] sm:$0xf]
        %v473 = vld [vmem:[%s324 + $0x10] sm:$0xf]
        %v474 = vld [vmem:[%s324 + $0x14] sm:$0xf]
        %v475 = vld [vmem:[%s324 + $0x18] sm:$0xf]
        %v476 = vld [vmem:[%s324 + $0x1c] sm:$0xf]
        %v477 = vld [vmem:[%s324 + $0x20] sm:$0xf]
        %v478 = vld [vmem:[%s324 + $0x24] sm:$0xf]
        %v479 = vld [vmem:[%s324 + $0x28] sm:$0xf]
        %v480 = vld [vmem:[%s324 + $0x2c] sm:$0xf]
        %v481 = vld [vmem:[%s324 + $0x30] sm:$0xf]
        %v482 = vld [vmem:[%s324 + $0x34] sm:$0xf]
        %v483 = vld [vmem:[%s324 + $0x38] sm:$0xf]
        %v484 = vld [vmem:[%s324 + $0x3c] sm:$0xf]
        %v501 = vunpack.c.l.b16 %v469
        %v502 = vunpack.c.l.b16 %v470
        %v503 = vunpack.c.l.b16 %v471
        %v504 = vunpack.c.l.b16 %v472
        %v505 = vunpack.c.l.b16 %v473
        %v506 = vunpack.c.l.b16 %v474
        %v507 = vunpack.c.l.b16 %v475
        %v508 = vunpack.c.l.b16 %v476
        %v509 = vunpack.c.l.b16 %v477
        %v510 = vunpack.c.l.b16 %v478
        %v511 = vunpack.c.l.b16 %v479
        %v512 = vunpack.c.l.b16 %v480
        %v513 = vunpack.c.l.b16 %v481
        %v514 = vunpack.c.l.b16 %v482
        %v515 = vunpack.c.l.b16 %v483
        %v516 = vunpack.c.l.b16 %v484
        %v517 = vpack.c.b16 %v502, %v501
        %v518 = vpack.c.b16 %v504, %v503
        %v519 = vpack.c.b16 %v506, %v505
        %v520 = vpack.c.b16 %v508, %v507
        %v521 = vpack.c.b16 %v510, %v509
        %v522 = vpack.c.b16 %v512, %v511
        %v523 = vpack.c.b16 %v514, %v513
        %v524 = vpack.c.b16 %v516, %v515
        %533 = vmatprep.subr.bf16.mxu0 0
        %534 = vmatpush1.bf16.msra.mxu0 %v517
        %535 = vmatprep.subr.bf16.mxu0 0
        %536 = vmatpush1.bf16.msra.mxu0 %v518
        %537 = vmatprep.subr.bf16.mxu0 0
        %538 = vmatpush1.bf16.msra.mxu0 %v519
        %539 = vmatprep.subr.bf16.mxu0 0
        %540 = vmatpush1.bf16.msra.mxu0 %v520
        %541 = vmatprep.subr.bf16.mxu0 0
        %542 = vmatpush1.bf16.msra.mxu0 %v521
        %543 = vmatprep.subr.bf16.mxu0 0
        %544 = vmatpush1.bf16.msra.mxu0 %v522
        %545 = vmatprep.subr.bf16.mxu0 0
        %546 = vmatpush1.bf16.msra.mxu0 %v523
        %547 = vmatprep.subr.bf16.mxu0 0
        %548 = vmatpush1.bf16.msra.mxu0 %v524
        %549 = vmatprep.subr.bf16.mxu0 0
        %550 = vmatpush1.bf16.msra.mxu0 0
        %551 = vmatprep.subr.bf16.mxu0 0
        %552 = vmatpush1.bf16.msra.mxu0 0
        %553 = vmatprep.subr.bf16.mxu0 0
        %554 = vmatpush1.bf16.msra.mxu0 0
        %555 = vmatprep.subr.bf16.mxu0 0
        %556 = vmatpush1.bf16.msra.mxu0 0
        %557 = vmatprep.subr.bf16.mxu0 0
        %558 = vmatpush1.bf16.msra.mxu0 0
        %559 = vmatprep.subr.bf16.mxu0 0
        %560 = vmatpush1.bf16.msra.mxu0 0
        %561 = vmatprep.subr.bf16.mxu0 0
        %562 = vmatpush1.bf16.msra.mxu0 0
        %563 = vmatprep.subr.bf16.mxu0 0
        %564 = vmatpush1.bf16.msra.mxu0 0
        %565 = vmatprep.mubr.bf16.mxu0 0
        %566 = vmatmul.mubr.bf16.gmra.mrb[0].mxu0 %v468
        %v567 = vpop.f32.mrb[0].mxu0
        %v568 = vadd.f32 0.0, %v567
        %v569 = vpop.f32.mrb[0].mxu0
        %v570 = vpop.f32.mrb[0].mxu0
        %v571 = vpop.f32.mrb[0].mxu0
        %572 = vdwg.mxu0
        %v573 = vld [vmem:[#allocation3] sm:$0xff]
        %v574 = vld [vmem:[%s332] sm:$0xff]
        %576 = vset.pattern.permute.xlu0 0
        %577 = vperm.xlu0 %576, %v574
        %v578 = vpop.permute.xlu0 %577
        %v580 = vmul.f32 %v578, %v568
        %v581 = vadd.f32 %v573, %v580
        %582 = vst [vmem:[#allocation3] sm:$0xff] %v581
      $region52: #{stochastic_two_layer_rgcn.3} parent=39 // pred_fallthru
        _
      %p583 = scmp.eq.s32.totalorder %s22, 2
      %p584 = pnand %p583, %p339
      %p585 = pneg %p584
      // Predicated region
      $region53: #{stochastic_two_layer_rgcn.3} parent=39 // pred_check
        _
      $region54: #{stochastic_two_layer_rgcn.3} parent=39 // pred_check_branch
        %587 = sbr.rel (%p584) target = $region56
      $region55: #{stochastic_two_layer_rgcn.3} parent=39 // pred_region
        %v588 = vld [vmem:[#allocation3] sm:$0xff]
        %589 = vst [vmem:[%s336] sm:$0xff] %v588
      $region56: #{stochastic_two_layer_rgcn.3} parent=39 // pred_fallthru
        _
      %p590 = scmp.lt.s32.totalorder %s21, 1
      %s591 = scalar_select %p590, %s21, 1
      %s592 = smul.addr %s591, 8
      %s593 = scalar_lea.vmem %s5, %s592
      // Predicated region
      $region57: #{stochastic_two_layer_rgcn.3} parent=39 // pred_check
        %p594 = pneg %p184
      $region58: #{stochastic_two_layer_rgcn.3} parent=39 // pred_check_branch
        %596 = sbr.rel (%p594) target = $region60
      $region59: #{stochastic_two_layer_rgcn.3} parent=39 // pred_region
        _
      $region60: #{stochastic_two_layer_rgcn.3} parent=39 // pred_fallthru
        _
    $region40: #{stochastic_two_layer_rgcn.3} parent=5 // pred_fallthru
      _
    %p597 = scmp.le.s32.totalorder 2, %s11
    // Predicated region
    $region61: #{stochastic_two_layer_rgcn.3} parent=5 // pred_check
      %p598 = pneg %p597
    $region62: #{stochastic_two_layer_rgcn.3} parent=5 // pred_check_branch
      %600 = sbr.rel (%p598) target = $region64
    $region63: #{stochastic_two_layer_rgcn.3} parent=5 // pred_region
      %s601 = ssub.s32 %s11, 2
      // Predicated region
      $region65: #{stochastic_two_layer_rgcn.3} parent=63 // pred_check
        %p602 = pneg %p190
      $region66: #{stochastic_two_layer_rgcn.3} parent=63 // pred_check_branch
        %604 = sbr.rel (%p602) target = $region68
      $region67: #{stochastic_two_layer_rgcn.3} parent=63 // pred_region
        %p605 = scmp.lt.s32.totalorder %s24, 1
        %s606 = scalar_select %p605, %s24, 1
        %s607 = smul.addr %s606, 8
        %s608 = scalar_lea.vmem %s5, %s607
      $region68: #{stochastic_two_layer_rgcn.3} parent=63 // pred_fallthru
        _
    $region64: #{stochastic_two_layer_rgcn.3} parent=5 // pred_fallthru
      _
  $region6: #{stochastic_two_layer_rgcn.3} parent=0 // loop_footer
    %s15 = sadd.s32 1, %s11
  $region7: #{stochastic_two_layer_rgcn.3} parent=0 // loop_footer_branch
    %10 = sbr.rel target = $region3
  $region8: #{stochastic_two_layer_rgcn.3} parent=0 // loop_exit
    _

// kernel: stochastic_two_layer_rgcn.2
$region0: #{stochastic_two_layer_rgcn.2}
  #allocation0 [shape = 'u32[]', space=smem, size = 0x4, offset = 0x4, fixed_abs, tag = 'smem constant byte address 0x4 - core index']
  #allocation1 [shape = 'u32[144,128]{1,0:T(1,128)}', space=vmem, size = 0x12000, scoped, tag = 'internal scratch']
  #allocation2 [shape = 'f32[16,128]{1,0:T(8,128)}', space=vmem, size = 0x2000, scoped, tag = 'scratch operand']
  #allocation3 [shape = 'f32[16,128]{1,0:T(8,128)}', space=vmem, size = 0x2000, scoped, tag = 'scratch operand']
  %s0 = inlined_call_operand.vmem [shape: bf16[3,32,128], index: 0, kind: input, shape index: {}]
  %s1 = inlined_call_operand.vmem [shape: bf16[128,128], index: 1, kind: input, shape index: {}]
  %s2 = inlined_call_operand.vmem [shape: bf16[3,128,128], index: 2, kind: input, shape index: {}]
  %s3 = inlined_call_operand.vmem [shape: f32[3,32,1], index: 3, kind: input, shape index: {}]
  %s4 = inlined_call_operand.vmem [shape: f32[1,128], index: 4, kind: input, shape index: {}]
  %s5 = inlined_call_operand.vmem [shape: bf16[32,128], index: 5, kind: output, shape index: {}]
  %s6 = sld [smem:[#allocation0]]
  $region69: #{stochastic_two_layer_rgcn.2} parent=0
    _
  %s8 = ssub.s32 1, %s6
  %s9 = scalar_select 0, %s8, %s6
  loop: start=0, step=1, limit=8
  $region2: #{stochastic_two_layer_rgcn.2} parent=0 // loop_pre_header
    _
  $region3: #{stochastic_two_layer_rgcn.2} parent=0 // loop_header
    %s11 = sphi 0, %s15
    %p12 = scmp.ge.s32.totalorder %s11, 8
    %s18 = sphi 0, %s37
    %s19 = sphi 0, %s33
    %s20 = sphi 0, %s29
    %s21 = sphi 0, %s18
    %s22 = sphi 0, %s19
    %s23 = sphi 0, %s20
    %s24 = sphi 0, %s21
    %s25 = sphi 0, %s22
    %s26 = sphi 0, %s23
    %s44 = sphi 0, %s46
    %s47 = sphi 0, %s44
    %s48 = sphi 0, %s47
    %s64 = sphi 0, %s48
    %s70 = sphi 0, %s72
    %s73 = sphi 0, %s70
    %s74 = sphi 0, %s73
    %s90 = sphi 0, %s74
    %s96 = sphi 0, %s98
    %s99 = sphi 0, %s96
    %s100 = sphi 0, %s99
    %s116 = sphi 0, %s100
    %s124 = sphi 0, %s126
    %s127 = sphi 0, %s124
    %s128 = sphi 0, %s127
    %s144 = sphi 0, %s128
    %s148 = sphi 0, %s148
    %s150 = sphi 0, %s148
    %s151 = sphi 0, %s150
    %s165 = sphi 0, %s151
    %s171 = sphi 0, %s173
    %s174 = sphi 0, %s171
    %s175 = sphi 0, %s174
    %s191 = sphi 0, %s175
  $region4: #{stochastic_two_layer_rgcn.2} parent=0 // loop_header_branch
    %14 = sbr.rel (%p12) target = $region8
  $region5: #{stochastic_two_layer_rgcn.2} parent=0 // loop_body
    %s16 = ssub.s32 %s11, 1
    %s17 = ssub.s32 %s11, 2
    %s27 = sadd.s32 1, %s20
    %p28 = scmp.ge.s32.totalorder %s27, 1
    %s29 = scalar_select %p28, 0, %s27
    %s30 = sadd.s32 1, %s19
    %s31 = scalar_select %p28, %s30, %s19
    %p32 = scmp.ge.s32.totalorder %s31, 3
    %s33 = scalar_select %p32, 0, %s31
    %s34 = sadd.s32 1, %s18
    %s35 = scalar_select %p32, %s34, %s18
    %p36 = scmp.ge.s32.totalorder %s35, 2
    %s37 = scalar_select %p36, 0, %s35
    %s38 = ssub.s32 %s19, %s33
    %s39 = ssub.s32 %s18, %s37
    %s40 = sor.u32 %s38, %s39
    %s41 = ssub.s32 %s20, %s29
    %s42 = sor.u32 %s40, %s41
    %p43 = scmp.eq.s32.totalorder %s42, 0
    %s45 = sadd.s32 %s44, 1
    %s46 = scalar_select %p43, %s44, %s45
    %p49 = pneg %p43
    %p50 = scmp.eq.s32.totalorder %s11, 5
    %p51 = por %p49, %p50
    %p52 = scmp.ne.s32.totalorder %s44, %s47
    %p53 = scmp.eq.s32.totalorder %s11, 0
    %p54 = por %p52, %p53
    %p55 = scmp.ne.s32.totalorder %s44, %s47
    %p56 = scmp.eq.s32.totalorder %s16, 5
    %p57 = por %p55, %p56
    %p58 = scmp.ne.s32.totalorder %s47, %s48
    %p59 = scmp.eq.s32.totalorder %s16, 0
    %p60 = por %p58, %p59
    %p61 = scmp.ne.s32.totalorder %s47, %s48
    %p62 = scmp.eq.s32.totalorder %s17, 5
    %p63 = por %p61, %p62
    %p65 = scmp.ne.s32.totalorder %s48, %s64
    %p66 = scmp.eq.s32.totalorder %s17, 0
    %p67 = por %p65, %p66
    %s68 = ssub.s32 %s20, %s29
    %p69 = scmp.eq.s32.totalorder %s68, 0
    %s71 = sadd.s32 %s70, 1
    %s72 = scalar_select %p69, %s70, %s71
    %p75 = pneg %p69
    %p76 = scmp.eq.s32.totalorder %s11, 5
    %p77 = por %p75, %p76
    %p78 = scmp.ne.s32.totalorder %s70, %s73
    %p79 = scmp.eq.s32.totalorder %s11, 0
    %p80 = por %p78, %p79
    %p81 = scmp.ne.s32.totalorder %s70, %s73
    %p82 = scmp.eq.s32.totalorder %s16, 5
    %p83 = por %p81, %p82
    %p84 = scmp.ne.s32.totalorder %s73, %s74
    %p85 = scmp.eq.s32.totalorder %s16, 0
    %p86 = por %p84, %p85
    %p87 = scmp.ne.s32.totalorder %s73, %s74
    %p88 = scmp.eq.s32.totalorder %s17, 5
    %p89 = por %p87, %p88
    %p91 = scmp.ne.s32.totalorder %s74, %s90
    %p92 = scmp.eq.s32.totalorder %s17, 0
    %p93 = por %p91, %p92
    %s94 = ssub.s32 %s19, %s33
    %p95 = scmp.eq.s32.totalorder %s94, 0
    %s97 = sadd.s32 %s96, 1
    %s98 = scalar_select %p95, %s96, %s97
    %p101 = pneg %p95
    %p102 = scmp.eq.s32.totalorder %s11, 5
    %p103 = por %p101, %p102
    %p104 = scmp.ne.s32.totalorder %s96, %s99
    %p105 = scmp.eq.s32.totalorder %s11, 0
    %p106 = por %p104, %p105
    %p107 = scmp.ne.s32.totalorder %s96, %s99
    %p108 = scmp.eq.s32.totalorder %s16, 5
    %p109 = por %p107, %p108
    %p110 = scmp.ne.s32.totalorder %s99, %s100
    %p111 = scmp.eq.s32.totalorder %s16, 0
    %p112 = por %p110, %p111
    %p113 = scmp.ne.s32.totalorder %s99, %s100
    %p114 = scmp.eq.s32.totalorder %s17, 5
    %p115 = por %p113, %p114
    %p117 = scmp.ne.s32.totalorder %s100, %s116
    %p118 = scmp.eq.s32.totalorder %s17, 0
    %p119 = por %p117, %p118
    %s120 = ssub.s32 %s19, %s33
    %s121 = ssub.s32 %s18, %s37
    %s122 = sor.u32 %s120, %s121
    %p123 = scmp.eq.s32.totalorder %s122, 0
    %s125 = sadd.s32 %s124, 1
    %s126 = scalar_select %p123, %s124, %s125
    %p129 = pneg %p123
    %p130 = scmp.eq.s32.totalorder %s11, 5
    %p131 = por %p129, %p130
    %p132 = scmp.ne.s32.totalorder %s124, %s127
    %p133 = scmp.eq.s32.totalorder %s11, 0
    %p134 = por %p132, %p133
    %p135 = scmp.ne.s32.totalorder %s124, %s127
    %p136 = scmp.eq.s32.totalorder %s16, 5
    %p137 = por %p135, %p136
    %p138 = scmp.ne.s32.totalorder %s127, %s128
    %p139 = scmp.eq.s32.totalorder %s16, 0
    %p140 = por %p138, %p139
    %p141 = scmp.ne.s32.totalorder %s127, %s128
    %p142 = scmp.eq.s32.totalorder %s17, 5
    %p143 = por %p141, %p142
    %p145 = scmp.ne.s32.totalorder %s128, %s144
    %p146 = scmp.eq.s32.totalorder %s17, 0
    %p147 = por %p145, %p146
    %s149 = sadd.s32 %s148, 1
    %p152 = scmp.eq.s32.totalorder %s11, 5
    %p153 = scmp.ne.s32.totalorder %s148, %s150
    %p154 = scmp.eq.s32.totalorder %s11, 0
    %p155 = por %p153, %p154
    %p156 = scmp.ne.s32.totalorder %s148, %s150
    %p157 = scmp.eq.s32.totalorder %s16, 5
    %p158 = por %p156, %p157
    %p159 = scmp.ne.s32.totalorder %s150, %s151
    %p160 = scmp.eq.s32.totalorder %s16, 0
    %p161 = por %p159, %p160
    %p162 = scmp.ne.s32.totalorder %s150, %s151
    %p163 = scmp.eq.s32.totalorder %s17, 5
    %p164 = por %p162, %p163
    %p166 = scmp.ne.s32.totalorder %s151, %s165
    %p167 = scmp.eq.s32.totalorder %s17, 0
    %p168 = por %p166, %p167
    %s169 = ssub.s32 %s18, %s37
    %p170 = scmp.eq.s32.totalorder %s169, 0
    %s172 = sadd.s32 %s171, 1
    %s173 = scalar_select %p170, %s171, %s172
    %p176 = pneg %p170
    %p177 = scmp.eq.s32.totalorder %s11, 5
    %p178 = por %p176, %p177
    %p179 = scmp.ne.s32.totalorder %s171, %s174
    %p180 = scmp.eq.s32.totalorder %s11, 0
    %p181 = por %p179, %p180
    %p182 = scmp.ne.s32.totalorder %s171, %s174
    %p183 = scmp.eq.s32.totalorder %s16, 5
    %p184 = por %p182, %p183
    %p185 = scmp.ne.s32.totalorder %s174, %s175
    %p186 = scmp.eq.s32.totalorder %s16, 0
    %p187 = por %p185, %p186
    %p188 = scmp.ne.s32.totalorder %s174, %s175
    %p189 = scmp.eq.s32.totalorder %s17, 5
    %p190 = por %p188, %p189
    %p192 = scmp.ne.s32.totalorder %s175, %s191
    %p193 = scmp.eq.s32.totalorder %s17, 0
    %p194 = por %p192, %p193
    %p195 = scmp.le.s32.totalorder 1, %s11
    %p196 = scmp.lt.s32.totalorder %s11, 7
    %p197 = pnand %p195, %p196
    %p198 = pneg %p197
    // Predicated region
    $region9: #{stochastic_two_layer_rgcn.2} parent=5 // pred_check
      _
    $region10: #{stochastic_two_layer_rgcn.2} parent=5 // pred_check_branch
      %200 = sbr.rel (%p197) target = $region12
    $region11: #{stochastic_two_layer_rgcn.2} parent=5 // pred_region
      %s201 = ssub.s32 %s11, 1
      // Predicated region
      $region13: #{stochastic_two_layer_rgcn.2} parent=11 // pred_check
        %p202 = pneg %p86
      $region14: #{stochastic_two_layer_rgcn.2} parent=11 // pred_check_branch
        %204 = sbr.rel (%p202) target = $region16
      $region15: #{stochastic_two_layer_rgcn.2} parent=11 // pred_region
        %s205 = smul.u32 16, %s23
        %p206 = scmp.lt.s32.totalorder %s205, 15
        %s207 = scalar_select %p206, %s205, 15
        %s208 = smul.addr %s207, 4
        %s209 = scalar_lea.vmem %s1, %s208
        %s210 = smul.u32 16, %s23
      $region16: #{stochastic_two_layer_rgcn.2} parent=11 // pred_fallthru
        _
      // Predicated region
      $region17: #{stochastic_two_layer_rgcn.2} parent=11 // pred_check
        %p211 = pneg %p161
      $region18: #{stochastic_two_layer_rgcn.2} parent=11 // pred_check_branch
        %213 = sbr.rel (%p211) target = $region20
      $region19: #{stochastic_two_layer_rgcn.2} parent=11 // pred_region
        _
      $region20: #{stochastic_two_layer_rgcn.2} parent=11 // pred_fallthru
        _
    $region12: #{stochastic_two_layer_rgcn.2} parent=5 // pred_fallthru
      _
    %p214 = scmp.lt.s32.totalorder %s11, 6
    // Predicated region
    $region21: #{stochastic_two_layer_rgcn.2} parent=5 // pred_check
      %p215 = pneg %p214
    $region22: #{stochastic_two_layer_rgcn.2} parent=5 // pred_check_branch
      %217 = sbr.rel (%p215) target = $region24
    $region23: #{stochastic_two_layer_rgcn.2} parent=5 // pred_region
      // Predicated region
      $region25: #{stochastic_two_layer_rgcn.2} parent=23 // pred_check
        %p218 = pneg %p54
      $region26: #{stochastic_two_layer_rgcn.2} parent=23 // pred_check_branch
        %220 = sbr.rel (%p218) target = $region28
      $region27: #{stochastic_two_layer_rgcn.2} parent=23 // pred_region
        %s221 = smul.u32 2, %s18
        %p222 = scmp.lt.s32.totalorder %s19, 2
        %s223 = scalar_select %p222, %s19, 2
        %p224 = scmp.lt.s32.totalorder %s221, 3
        %s225 = scalar_select %p224, %s221, 3
        %p226 = scmp.lt.s32.totalorder %s20, 0
        %s227 = scalar_select %p226, %s20, 0
        %s228 = sadd.s32 %s227, %s225
        %s229 = smul.addr %s223, 4
        %s230 = sadd.s32 %s228, %s229
        %s231 = smul.addr %s230, 4
        %s232 = scalar_lea.vmem %s0, %s231
        %s233 = smul.u32 2, %s18
      $region28: #{stochastic_two_layer_rgcn.2} parent=23 // pred_fallthru
        _
      // Predicated region
      $region29: #{stochastic_two_layer_rgcn.2} parent=23 // pred_check
        %p234 = pneg %p106
      $region30: #{stochastic_two_layer_rgcn.2} parent=23 // pred_check_branch
        %236 = sbr.rel (%p234) target = $region32
      $region31: #{stochastic_two_layer_rgcn.2} parent=23 // pred_region
        %p237 = scmp.lt.s32.totalorder %s19, 2
        %s238 = scalar_select %p237, %s19, 2
        %s239 = smul.addr %s238, 16
        %s240 = smul.addr %s239, 4
        %s241 = scalar_lea.vmem %s2, %s240
      $region32: #{stochastic_two_layer_rgcn.2} parent=23 // pred_fallthru
        _
      // Predicated region
      $region33: #{stochastic_two_layer_rgcn.2} parent=23 // pred_check
        %p242 = pneg %p134
      $region34: #{stochastic_two_layer_rgcn.2} parent=23 // pred_check_branch
        %244 = sbr.rel (%p242) target = $region36
      $region35: #{stochastic_two_layer_rgcn.2} parent=23 // pred_region
        %s245 = smul.u32 2, %s18
        %p246 = scmp.lt.s32.totalorder %s19, 2
        %s247 = scalar_select %p246, %s19, 2
        %p248 = scmp.lt.s32.totalorder %s245, 3
        %s249 = scalar_select %p248, %s245, 3
        %s250 = smul.addr %s247, 4
        %s251 = sadd.s32 %s249, %s250
        %s252 = smul.addr %s251, 8
        %s253 = scalar_lea.vmem %s3, %s252
        %s254 = smul.u32 2, %s18
      $region36: #{stochastic_two_layer_rgcn.2} parent=23 // pred_fallthru
        _
    $region24: #{stochastic_two_layer_rgcn.2} parent=5 // pred_fallthru
      _
    %p255 = scmp.le.s32.totalorder 1, %s11
    %p256 = scmp.lt.s32.totalorder %s11, 7
    %p257 = pnand %p255, %p256
    %p258 = pneg %p257
    // Predicated region
    $region37: #{stochastic_two_layer_rgcn.2} parent=5 // pred_check
      _
    $region38: #{stochastic_two_layer_rgcn.2} parent=5 // pred_check_branch
      %260 = sbr.rel (%p257) target = $region40
    $region39: #{stochastic_two_layer_rgcn.2} parent=5 // pred_region
      %s261 = ssub.s32 %s11, 1
      %s262 = smul.u32 2, %s21
      %p263 = scmp.lt.s32.totalorder %s22, 2
      %s264 = scalar_select %p263, %s22, 2
      %p265 = scmp.lt.s32.totalorder %s262, 3
      %s266 = scalar_select %p265, %s262, 3
      %p267 = scmp.lt.s32.totalorder %s23, 0
      %s268 = scalar_select %p267, %s23, 0
      %s269 = sadd.s32 %s268, %s266
      %s270 = smul.addr %s264, 4
      %s271 = sadd.s32 %s269, %s270
      %s272 = smul.addr %s271, 4
      %s273 = scalar_lea.vmem %s0, %s272
      %p274 = pneg %p60
      %p275 = pneg %p57
      %s276 = smul.u32 16, %s23
      %p277 = scmp.lt.s32.totalorder %s276, 15
      %s278 = scalar_select %p277, %s276, 15
      %s279 = smul.addr %s278, 4
      %s280 = scalar_lea.vmem %s1, %s279
      %p281 = pneg %p86
      %p282 = pneg %p83
      %p283 = scmp.lt.s32.totalorder %s22, 2
      %s284 = scalar_select %p283, %s22, 2
      %s285 = smul.addr %s284, 16
      %s286 = smul.addr %s285, 4
      %s287 = scalar_lea.vmem %s2, %s286
      %p288 = pneg %p112
      %p289 = pneg %p109
      %s290 = smul.u32 2, %s21
      %p291 = scmp.lt.s32.totalorder %s22, 2
      %s292 = scalar_select %p291, %s22, 2
      %p293 = scmp.lt.s32.totalorder %s290, 3
      %s294 = scalar_select %p293, %s290, 3
      %s295 = smul.addr %s292, 4
      %s296 = sadd.s32 %s294, %s295
      %s297 = smul.addr %s296, 8
      %s298 = scalar_lea.vmem %s3, %s297
      %p299 = pneg %p140
      %p300 = pneg %p137
      %p301 = pneg %p161
      %p302 = pneg %p158
      %p303 = pneg %p187
      %p304 = pneg %p184
      %s305 = smul.u32 2, %s21
      %p306 = scmp.lt.s32.totalorder %s305, 3
      %s307 = scalar_select %p306, %s305, 3
      %s308 = smul.addr %s307, 4
      %s309 = scalar_lea.vmem %s5, %s308
      %s310 = smul.u32 2, %s21
      %p311 = scmp.lt.s32.totalorder %s22, 2
      %s312 = scalar_select %p311, %s22, 2
      %p313 = scmp.lt.s32.totalorder %s310, 3
      %s314 = scalar_select %p313, %s310, 3
      %p315 = scmp.lt.s32.totalorder %s23, 0
      %s316 = scalar_select %p315, %s23, 0
      %s317 = sadd.s32 %s316, %s314
      %s318 = smul.addr %s312, 4
      %s319 = sadd.s32 %s317, %s318
      %s320 = smul.addr %s319, 4
      %s321 = scalar_lea.vmem %s0, %s320
      %s322 = smul.u32 2, %s21
      %s323 = smul.u32 16, %s23
      %p324 = scmp.lt.s32.totalorder %s323, 15
      %s325 = scalar_select %p324, %s323, 15
      %s326 = smul.addr %s325, 4
      %s327 = scalar_lea.vmem %s1, %s326
      %s328 = smul.u32 16, %s23
      %p329 = scmp.lt.s32.totalorder %s22, 2
      %s330 = scalar_select %p329, %s22, 2
      %s331 = smul.addr %s330, 16
      %s332 = smul.addr %s331, 4
      %s333 = scalar_lea.vmem %s2, %s332
      %s334 = smul.u32 2, %s21
      %p335 = scmp.lt.s32.totalorder %s22, 2
      %s336 = scalar_select %p335, %s22, 2
      %p337 = scmp.lt.s32.totalorder %s334, 3
      %s338 = scalar_select %p337, %s334, 3
      %s339 = smul.addr %s336, 4
      %s340 = sadd.s32 %s338, %s339
      %s341 = smul.addr %s340, 8
      %s342 = scalar_lea.vmem %s3, %s341
      %s343 = smul.u32 2, %s21
      %s344 = smul.u32 2, %s21
      %p345 = scmp.lt.s32.totalorder %s344, 3
      %s346 = scalar_select %p345, %s344, 3
      %s347 = smul.addr %s346, 4
      %s348 = scalar_lea.vmem %s5, %s347
      %s349 = smul.u32 2, %s21
      %p351 = scmp.eq.s32.totalorder %s22, 0
      %p352 = scmp.eq.s32.totalorder %s23, 0
      %p353 = pnand %p351, %p352
      %p354 = pneg %p353
      // Predicated region
      $region41: #{stochastic_two_layer_rgcn.2} parent=39 // pred_check
        _
      $region42: #{stochastic_two_layer_rgcn.2} parent=39 // pred_check_branch
        %356 = sbr.rel (%p353) target = $region44
      $region43: #{stochastic_two_layer_rgcn.2} parent=39 // pred_region
        %v357 = vld [vmem:[%s4] sm:$0x1]
        %v359 = vlaneseq
        %v360 = vshrl.u32 %v359, 7
        %v361 = vsub.s32 0, %v360
        %v362 = vrot.slane %v357, %v361
        %364 = vst [vmem:[#allocation3] sm:$0xff] %v362
        %365 = vst [vmem:[#allocation3 + $0x8] sm:$0xff] %v362
      $region44: #{stochastic_two_layer_rgcn.2} parent=39 // pred_fallthru
        _
      // Predicated region
      $region45: #{stochastic_two_layer_rgcn.2} parent=39 // pred_check
        %p366 = pneg %p352
      $region46: #{stochastic_two_layer_rgcn.2} parent=39 // pred_check_branch
        %368 = sbr.rel (%p366) target = $region48
      $region47: #{stochastic_two_layer_rgcn.2} parent=39 // pred_region
        %369 = vst [vmem:[#allocation2] sm:$0xff] 0.0
        %370 = vst [vmem:[#allocation2 + $0x8] sm:$0xff] 0.0
      $region48: #{stochastic_two_layer_rgcn.2} parent=39 // pred_fallthru
        _
      %v371 = vld [vmem:[#allocation2] sm:$0xff]
      %v372 = vld [vmem:[#allocation2 + $0x8] sm:$0xff]
      %v373 = vld [vmem:[%s321] sm:$0xf]
      %v374 = vld [vmem:[%s321 + $0x4] sm:$0xf]
      %v375 = vld [vmem:[%s327] sm:$0xf]
      %v376 = vld [vmem:[%s327 + $0x4] sm:$0xf]
      %v377 = vld [vmem:[%s327 + $0x8] sm:$0xf]
      %v378 = vld [vmem:[%s327 + $0xc] sm:$0xf]
      %v379 = vld [vmem:[%s327 + $0x10] sm:$0xf]
      %v380 = vld [vmem:[%s327 + $0x14] sm:$0xf]
      %v381 = vld [vmem:[%s327 + $0x18] sm:$0xf]
      %v382 = vld [vmem:[%s327 + $0x1c] sm:$0xf]
      %v383 = vld [vmem:[%s327 + $0x20] sm:$0xf]
      %v384 = vld [vmem:[%s327 + $0x24] sm:$0xf]
      %v385 = vld [vmem:[%s327 + $0x28] sm:$0xf]
      %v386 = vld [vmem:[%s327 + $0x2c] sm:$0xf]
      %v387 = vld [vmem:[%s327 + $0x30] sm:$0xf]
      %v388 = vld [vmem:[%s327 + $0x34] sm:$0xf]
      %v389 = vld [vmem:[%s327 + $0x38] sm:$0xf]
      %v390 = vld [vmem:[%s327 + $0x3c] sm:$0xf]
      %v393 = vunpack.c.l.b16 %v373
      %v394 = vunpack.c.l.b16 %v374
      %v395 = vpack.c.b16 %v394, %v393
      %v413 = vunpack.c.l.b16 %v375
      %v414 = vunpack.c.l.b16 %v376
      %v415 = vunpack.c.l.b16 %v377
      %v416 = vunpack.c.l.b16 %v378
      %v417 = vunpack.c.l.b16 %v379
      %v418 = vunpack.c.l.b16 %v380
      %v419 = vunpack.c.l.b16 %v381
      %v420 = vunpack.c.l.b16 %v382
      %v421 = vunpack.c.l.b16 %v383
      %v422 = vunpack.c.l.b16 %v384
      %v423 = vunpack.c.l.b16 %v385
      %v424 = vunpack.c.l.b16 %v386
      %v425 = vunpack.c.l.b16 %v387
      %v426 = vunpack.c.l.b16 %v388
      %v427 = vunpack.c.l.b16 %v389
      %v428 = vunpack.c.l.b16 %v390
      %v429 = vpack.c.b16 %v414, %v413
      %v430 = vpack.c.b16 %v416, %v415
      %v431 = vpack.c.b16 %v418, %v417
      %v432 = vpack.c.b16 %v420, %v419
      %v433 = vpack.c.b16 %v422, %v421
      %v434 = vpack.c.b16 %v424, %v423
      %v435 = vpack.c.b16 %v426, %v425
      %v436 = vpack.c.b16 %v428, %v427
      %445 = vmatprep.subr.bf16.mxu0 0
      %446 = vmatpush1.bf16.msra.mxu0 %v429
      %447 = vmatprep.subr.bf16.mxu0 0
      %448 = vmatpush1.bf16.msra.mxu0 %v430
      %449 = vmatprep.subr.bf16.mxu0 0
      %450 = vmatpush1.bf16.msra.mxu0 %v431
      %451 = vmatprep.subr.bf16.mxu0 0
      %452 = vmatpush1.bf16.msra.mxu0 %v432
      %453 = vmatprep.subr.bf16.mxu0 0
      %454 = vmatpush1.bf16.msra.mxu0 %v433
      %455 = vmatprep.subr.bf16.mxu0 0
      %456 = vmatpush1.bf16.msra.mxu0 %v434
      %457 = vmatprep.subr.bf16.mxu0 0
      %458 = vmatpush1.bf16.msra.mxu0 %v435
      %459 = vmatprep.subr.bf16.mxu0 0
      %460 = vmatpush1.bf16.msra.mxu0 %v436
      %461 = vmatprep.subr.bf16.mxu0 0
      %462 = vmatpush1.bf16.msra.mxu0 0
      %463 = vmatprep.subr.bf16.mxu0 0
      %464 = vmatpush1.bf16.msra.mxu0 0
      %465 = vmatprep.subr.bf16.mxu0 0
      %466 = vmatpush1.bf16.msra.mxu0 0
      %467 = vmatprep.subr.bf16.mxu0 0
      %468 = vmatpush1.bf16.msra.mxu0 0
      %469 = vmatprep.subr.bf16.mxu0 0
      %470 = vmatpush1.bf16.msra.mxu0 0
      %471 = vmatprep.subr.bf16.mxu0 0
      %472 = vmatpush1.bf16.msra.mxu0 0
      %473 = vmatprep.subr.bf16.mxu0 0
      %474 = vmatpush1.bf16.msra.mxu0 0
      %475 = vmatprep.subr.bf16.mxu0 0
      %476 = vmatpush1.bf16.msra.mxu0 0
      %477 = vmatprep.mubr.bf16.mxu0 0
      %478 = vmatmul.mubr.bf16.gmra.mrb[0].mxu0 %v395
      %v479 = vpop.f32.mrb[0].mxu0
      %v480 = vadd.f32 0.0, %v479
      %v481 = vpop.f32.mrb[0].mxu0
      %v482 = vpop.f32.mrb[0].mxu0
      %v483 = vadd.f32 0.0, %v482
      %v484 = vpop.f32.mrb[0].mxu0
      %485 = vdwg.mxu0
      %v486 = vadd.f32 %v371, %v480
      %v487 = vadd.f32 %v372, %v483
      %488 = vst [vmem:[#allocation2] sm:$0xff] %v486
      %489 = vst [vmem:[#allocation2 + $0x8] sm:$0xff] %v487
      // Predicated region
      $region49: #{stochastic_two_layer_rgcn.2} parent=39 // pred_check
        %p490 = pneg %p352
      $region50: #{stochastic_two_layer_rgcn.2} parent=39 // pred_check_branch
        %492 = sbr.rel (%p490) target = $region52
      $region51: #{stochastic_two_layer_rgcn.2} parent=39 // pred_region
        %v493 = vld [vmem:[#allocation2] sm:$0xff]
        %v494 = vld [vmem:[#allocation2 + $0x8] sm:$0xff]
        %v495 = vpack.c.bf16 %v494, %v493
        %v496 = vld [vmem:[%s333] sm:$0xf]
        %v497 = vld [vmem:[%s333 + $0x4] sm:$0xf]
        %v498 = vld [vmem:[%s333 + $0x8] sm:$0xf]
        %v499 = vld [vmem:[%s333 + $0xc] sm:$0xf]
        %v500 = vld [vmem:[%s333 + $0x10] sm:$0xf]
        %v501 = vld [vmem:[%s333 + $0x14] sm:$0xf]
        %v502 = vld [vmem:[%s333 + $0x18] sm:$0xf]
        %v503 = vld [vmem:[%s333 + $0x1c] sm:$0xf]
        %v504 = vld [vmem:[%s333 + $0x20] sm:$0xf]
        %v505 = vld [vmem:[%s333 + $0x24] sm:$0xf]
        %v506 = vld [vmem:[%s333 + $0x28] sm:$0xf]
        %v507 = vld [vmem:[%s333 + $0x2c] sm:$0xf]
        %v508 = vld [vmem:[%s333 + $0x30] sm:$0xf]
        %v509 = vld [vmem:[%s333 + $0x34] sm:$0xf]
        %v510 = vld [vmem:[%s333 + $0x38] sm:$0xf]
        %v511 = vld [vmem:[%s333 + $0x3c] sm:$0xf]
        %v528 = vunpack.c.l.b16 %v496
        %v529 = vunpack.c.l.b16 %v497
        %v530 = vunpack.c.l.b16 %v498
        %v531 = vunpack.c.l.b16 %v499
        %v532 = vunpack.c.l.b16 %v500
        %v533 = vunpack.c.l.b16 %v501
        %v534 = vunpack.c.l.b16 %v502
        %v535 = vunpack.c.l.b16 %v503
        %v536 = vunpack.c.l.b16 %v504
        %v537 = vunpack.c.l.b16 %v505
        %v538 = vunpack.c.l.b16 %v506
        %v539 = vunpack.c.l.b16 %v507
        %v540 = vunpack.c.l.b16 %v508
        %v541 = vunpack.c.l.b16 %v509
        %v542 = vunpack.c.l.b16 %v510
        %v543 = vunpack.c.l.b16 %v511
        %v544 = vpack.c.b16 %v529, %v528
        %v545 = vpack.c.b16 %v531, %v530
        %v546 = vpack.c.b16 %v533, %v532
        %v547 = vpack.c.b16 %v535, %v534
        %v548 = vpack.c.b16 %v537, %v536
        %v549 = vpack.c.b16 %v539, %v538
        %v550 = vpack.c.b16 %v541, %v540
        %v551 = vpack.c.b16 %v543, %v542
        %560 = vmatprep.subr.bf16.mxu0 0
        %561 = vmatpush1.bf16.msra.mxu0 %v544
        %562 = vmatprep.subr.bf16.mxu0 0
        %563 = vmatpush1.bf16.msra.mxu0 %v545
        %564 = vmatprep.subr.bf16.mxu0 0
        %565 = vmatpush1.bf16.msra.mxu0 %v546
        %566 = vmatprep.subr.bf16.mxu0 0
        %567 = vmatpush1.bf16.msra.mxu0 %v547
        %568 = vmatprep.subr.bf16.mxu0 0
        %569 = vmatpush1.bf16.msra.mxu0 %v548
        %570 = vmatprep.subr.bf16.mxu0 0
        %571 = vmatpush1.bf16.msra.mxu0 %v549
        %572 = vmatprep.subr.bf16.mxu0 0
        %573 = vmatpush1.bf16.msra.mxu0 %v550
        %574 = vmatprep.subr.bf16.mxu0 0
        %575 = vmatpush1.bf16.msra.mxu0 %v551
        %576 = vmatprep.subr.bf16.mxu0 0
        %577 = vmatpush1.bf16.msra.mxu0 0
        %578 = vmatprep.subr.bf16.mxu0 0
        %579 = vmatpush1.bf16.msra.mxu0 0
        %580 = vmatprep.subr.bf16.mxu0 0
        %581 = vmatpush1.bf16.msra.mxu0 0
        %582 = vmatprep.subr.bf16.mxu0 0
        %583 = vmatpush1.bf16.msra.mxu0 0
        %584 = vmatprep.subr.bf16.mxu0 0
        %585 = vmatpush1.bf16.msra.mxu0 0
        %586 = vmatprep.subr.bf16.mxu0 0
        %587 = vmatpush1.bf16.msra.mxu0 0
        %588 = vmatprep.subr.bf16.mxu0 0
        %589 = vmatpush1.bf16.msra.mxu0 0
        %590 = vmatprep.subr.bf16.mxu0 0
        %591 = vmatpush1.bf16.msra.mxu0 0
        %592 = vmatprep.mubr.bf16.mxu0 0
        %593 = vmatmul.mubr.bf16.gmra.mrb[0].mxu0 %v495
        %v594 = vpop.f32.mrb[0].mxu0
        %v595 = vadd.f32 0.0, %v594
        %v596 = vpop.f32.mrb[0].mxu0
        %v597 = vpop.f32.mrb[0].mxu0
        %v598 = vadd.f32 0.0, %v597
        %v599 = vpop.f32.mrb[0].mxu0
        %600 = vdwg.mxu0
        %v601 = vld [vmem:[#allocation3] sm:$0xff]
        %v602 = vld [vmem:[#allocation3 + $0x8] sm:$0xff]
        %v603 = vld [vmem:[%s342] sm:$0xff]
        %v604 = vld [vmem:[%s342 + $0x8] sm:$0xff]
        %606 = vset.pattern.permute.xlu0 0
        %607 = vperm.xlu0 %606, %v603
        %v608 = vpop.permute.xlu0 %607
        %611 = vset.pattern.permute.xlu0 0
        %612 = vperm.xlu0 %611, %v604
        %v613 = vpop.permute.xlu0 %612
        %v615 = vmul.f32 %v608, %v595
        %v616 = vmul.f32 %v613, %v598
        %v617 = vadd.f32 %v601, %v615
        %v618 = vadd.f32 %v602, %v616
        %619 = vst [vmem:[#allocation3] sm:$0xff] %v617
        %620 = vst [vmem:[#allocation3 + $0x8] sm:$0xff] %v618
      $region52: #{stochastic_two_layer_rgcn.2} parent=39 // pred_fallthru
        _
      %p621 = scmp.eq.s32.totalorder %s22, 2
      %p622 = pnand %p621, %p352
      %p623 = pneg %p622
      // Predicated region
      $region53: #{stochastic_two_layer_rgcn.2} parent=39 // pred_check
        _
      $region54: #{stochastic_two_layer_rgcn.2} parent=39 // pred_check_branch
        %625 = sbr.rel (%p622) target = $region56
      $region55: #{stochastic_two_layer_rgcn.2} parent=39 // pred_region
        %v626 = vld [vmem:[#allocation3] sm:$0xff]
        %v627 = vld [vmem:[#allocation3 + $0x8] sm:$0xff]
        %v628 = vpack.c.bf16 %v627, %v626
        %v630 = vunpack.c.l.b16 %v628
        %v631 = vunpack.c.h.b16 %v628
        %v632 = vpack.c.b16 %v630, %v630
        %v633 = vpack.c.b16 %v631, %v631
        %636 = vst [vmem:[%s348] sm:$0xf] %v632
        %637 = vst [vmem:[%s348 + $0x4] sm:$0xf] %v633
      $region56: #{stochastic_two_layer_rgcn.2} parent=39 // pred_fallthru
        _
      %s638 = smul.u32 2, %s21
      %p639 = scmp.lt.s32.totalorder %s638, 3
      %s640 = scalar_select %p639, %s638, 3
      %s641 = smul.addr %s640, 4
      %s642 = scalar_lea.vmem %s5, %s641
      // Predicated region
      $region57: #{stochastic_two_layer_rgcn.2} parent=39 // pred_check
        %p643 = pneg %p184
      $region58: #{stochastic_two_layer_rgcn.2} parent=39 // pred_check_branch
        %645 = sbr.rel (%p643) target = $region60
      $region59: #{stochastic_two_layer_rgcn.2} parent=39 // pred_region
        %s646 = smul.u32 2, %s21
      $region60: #{stochastic_two_layer_rgcn.2} parent=39 // pred_fallthru
        _
    $region40: #{stochastic_two_layer_rgcn.2} parent=5 // pred_fallthru
      _
    %p647 = scmp.le.s32.totalorder 2, %s11
    // Predicated region
    $region61: #{stochastic_two_layer_rgcn.2} parent=5 // pred_check
      %p648 = pneg %p647
    $region62: #{stochastic_two_layer_rgcn.2} parent=5 // pred_check_branch
      %650 = sbr.rel (%p648) target = $region64
    $region63: #{stochastic_two_layer_rgcn.2} parent=5 // pred_region
      %s651 = ssub.s32 %s11, 2
      // Predicated region
      $region65: #{stochastic_two_layer_rgcn.2} parent=63 // pred_check
        %p652 = pneg %p190
      $region66: #{stochastic_two_layer_rgcn.2} parent=63 // pred_check_branch
        %654 = sbr.rel (%p652) target = $region68
      $region67: #{stochastic_two_layer_rgcn.2} parent=63 // pred_region
        %s655 = smul.u32 2, %s24
        %p656 = scmp.lt.s32.totalorder %s655, 3
        %s657 = scalar_select %p656, %s655, 3
        %s658 = smul.addr %s657, 4
        %s659 = scalar_lea.vmem %s5, %s658
      $region68: #{stochastic_two_layer_rgcn.2} parent=63 // pred_fallthru
        _
    $region64: #{stochastic_two_layer_rgcn.2} parent=5 // pred_fallthru
      _
  $region6: #{stochastic_two_layer_rgcn.2} parent=0 // loop_footer
    %s15 = sadd.s32 1, %s11
  $region7: #{stochastic_two_layer_rgcn.2} parent=0 // loop_footer_branch
    %10 = sbr.rel target = $region3
  $region8: #{stochastic_two_layer_rgcn.2} parent=0 // loop_exit
    _

</llo_original>
